<compile_context>
chip_gen: v5e
topology: v5e:2x2
jax: 0.10.0
libtpu: 0.0.40
codegen_flags: <defaults>
</compile_context>

<pallas_src>
import math

import jax
import jax.numpy as jnp
from jax.experimental import pallas as pl
from jax.experimental.pallas import tpu as pltpu

# ------------------------- "Metadata2Config" -------------------------
EMBED_LEN   = 32           # config.embed_len
EMB_HIDDEN1 = 32           # config.emb_hidden1 == config.encoder1_config.hidden
EMB_HIDDEN2 = 32           # config.emb_hidden2 == config.hidden (use_entity=False)
HIDDEN      = EMB_HIDDEN2  # config.hidden
FFN         = 64           # encoder2_config feed-forward width
NHEADS      = 4
HEAD_DIM    = HIDDEN // NHEADS
N_SUBCATEGORY = 6          # TODO(synk): len(SubCategory) not available; using 6 classes.
LN_EPS      = 1e-5
NEG_INF     = -1e9
CPAD        = 128          # lane-dense padding of every task-head output
BLOCK_ROWS  = 256          # target BT*S rows per grid step (128 on v5e, 256 on v6e/v7x)

TASKS = ('msr', 'agg_score', 'dim_score', 'msr_score', 'key_score', 'msr_pair', 'msr_type')
NUM_TASKS = len(TASKS)
HEAD_CLASSES = {'msr': 2, 'agg_score': 9, 'dim_score': 2, 'msr_score': 2,
                'key_score': 2, 'msr_type': N_SUBCATEGORY}
PAIR_TASK_IDX = TASKS.index('msr_pair')      # 5

# per-task bias/LN slab row layout (each row padded to CPAD lanes)
R_BQKV, R_BO, R_G1, R_BE1, R_B1, R_B2, R_G2, R_BE2, R_BHEAD = range(9)
TVEC_ROWS = 9
# shared bias slab row layout
R_BC1, R_BC2, R_BPAIR = range(3)
SVEC_ROWS = 3


def _layer_norm(x, gamma, beta):
    # single-pass variance: E[x^2] - E[x]^2 (one sweep over the data)
    mu = jnp.mean(x, axis=-1, keepdims=True)
    var = jnp.mean(x * x, axis=-1, keepdims=True) - mu * mu
    return (x - mu) * jax.lax.rsqrt(var + LN_EPS) * gamma + beta


# ------------------------- fused forward kernel -------------------------
def _fused_kernel(x_ref, bias_ref, blockmask_ref, idx_ref,
                  wc1_ref, wc2_ref, svec_ref,
                  wqkv_ref, wo_ref, w1_ref, w2_ref, whead_ref, tvec_ref,
                  wpair_ref,
                  out_field_ref, out_pair_ref):
    """One grid step = (task t, batch tile b): compress -> encoder layer -> heads."""
    t = pl.program_id(0)
    M = x_ref.shape[0]                    # BT * S rows in this batch tile
    bf16 = jnp.bfloat16

    # unpack the two bias/LN slabs (one DMA each instead of ~12 tiny refs)
    sv = svec_ref[...]                    # (3, 128)   shared
    tv = tvec_ref[...]                    # (9, 128)   per task
    bc1   = sv[R_BC1:R_BC1 + 1, :EMB_HIDDEN1]
    bc2   = sv[R_BC2:R_BC2 + 1, :HIDDEN]
    bpair = sv[R_BPAIR:R_BPAIR + 1, :]
    bqkv  = tv[R_BQKV:R_BQKV + 1, :3 * HIDDEN]
    bo    = tv[R_BO:R_BO + 1, :HIDDEN]
    g1    = tv[R_G1:R_G1 + 1, :HIDDEN]
    be1   = tv[R_BE1:R_BE1 + 1, :HIDDEN]
    b1    = tv[R_B1:R_B1 + 1, :FFN]
    b2    = tv[R_B2:R_B2 + 1, :HIDDEN]
    g2    = tv[R_G2:R_G2 + 1, :HIDDEN]
    be2   = tv[R_BE2:R_BE2 + 1, :HIDDEN]
    bhead = tv[R_BHEAD:R_BHEAD + 1, :]

    # embedding_compress1 -> embedding_compress2 (eval-mode dropout == identity)
    x16 = x_ref[...]                                              # (M, E) bf16
    e1 = jnp.dot(x16, wc1_ref[...], preferred_element_type=jnp.float32) + bc1
    y  = jnp.dot(e1.astype(bf16), wc2_ref[...], preferred_element_type=jnp.float32) + bc2

    # additive attention mask: block-diagonal same-sample mask + key-validity mask
    attn_bias = blockmask_ref[...] + bias_ref[...]                # (M, M) f32

    # fused Q|K|V projection: one lane-dense (32 -> 96) bf16 matmul
    y16 = y.astype(bf16)
    qkv = jnp.dot(y16, wqkv_ref[...], preferred_element_type=jnp.float32) + bqkv
    qkv16 = qkv.astype(bf16)
    wo = wo_ref[...]
    scale = 1.0 / math.sqrt(HEAD_DIM)
    contract_last = (((1,), (1,)), ((), ()))                       # q @ k.T
    attn = jnp.zeros((M, HIDDEN), jnp.float32)
    for h in range(NHEADS):
        lo, hi = h * HEAD_DIM, (h + 1) * HEAD_DIM
        qh = qkv16[:, lo:hi]
        kh = qkv16[:, HIDDEN + lo:HIDDEN + hi]
        vh = qkv16[:, 2 * HIDDEN + lo:2 * HIDDEN + hi]
        s = jax.lax.dot_general(qh, kh, contract_last,
                                preferred_element_type=jnp.float32)
        s = s * scale + attn_bias
        s = s - jnp.max(s, axis=-1, keepdims=True)
        p = jnp.exp(s)
        p = p * pl.reciprocal(jnp.sum(p, axis=-1, keepdims=True), approx=True)
        ctx = jnp.dot(p.astype(bf16), vh, preferred_element_type=jnp.float32)
        # fold each head's context through its W_O row slice (no lane concat)
        attn = attn + jnp.dot(ctx.astype(bf16), wo[lo:hi, :],
                              preferred_element_type=jnp.float32)
    attn = attn + bo

    # post-LN residual blocks
    h1 = _layer_norm(y + attn, g1, be1)
    f = jnp.dot(h1.astype(bf16), w1_ref[...], preferred_element_type=jnp.float32) + b1
    f = jnp.maximum(f, 0.0)
    f = jnp.dot(f.astype(bf16), w2_ref[...], preferred_element_type=jnp.float32) + b2
    enc = _layer_norm(h1 + f, g2, be2)

    # per-field task head fused with LogSoftmax; padded classes carry -1e9 bias and
    # zero weights so valid columns are exact and the store is lane-dense (128 wide).
    logits = jnp.dot(enc.astype(bf16), whead_ref[...],
                     preferred_element_type=jnp.float32) + bhead
    z = logits - jnp.max(logits, axis=-1, keepdims=True)
    out_field_ref[...] = (z - jnp.log(jnp.sum(jnp.exp(z), axis=-1, keepdims=True))
                          ).astype(out_field_ref.dtype)

    # msr_pair head: only computed on the msr_pair task step (perf review).  Other
    # task slots of out_pair are zeroed once so their (unread) writeback is
    # deterministic instead of stale VMEM garbage.
    @pl.when(t != PAIR_TASK_IDX)
    def _():
        out_pair_ref[...] = jnp.zeros_like(out_pair_ref)

    @pl.when(t == PAIR_TASK_IDX)
    def _():
        idxp = idx_ref[...]                                       # (BT*P, 2) int32 row ids
        rows = idxp.shape[0]
        lane = jax.lax.broadcasted_iota(jnp.int32, (rows, M), 1)
        # one-hot matmul gather on the MXU; f32 one-hot x f32 enc reproduces the rows
        # exactly, and out-of-range ids simply give all-zero rows (no OOB VMEM reads).
        sel1 = (lane == idxp[:, 0:1]).astype(jnp.float32)
        sel2 = (lane == idxp[:, 1:2]).astype(jnp.float32)
        pair1 = jnp.dot(sel1, enc, preferred_element_type=jnp.float32)
        pair2 = jnp.dot(sel2, enc, preferred_element_type=jnp.float32)
        wp = wpair_ref[...]
        plog = (jnp.dot(pair1.astype(bf16), wp[:HIDDEN, :],
                        preferred_element_type=jnp.float32)
                + jnp.dot(pair2.astype(bf16), wp[HIDDEN:, :],
                          preferred_element_type=jnp.float32)
                + bpair)
        zp = plog - jnp.max(plog, axis=-1, keepdims=True)
        out_pair_ref[...] = (zp - jnp.log(jnp.sum(jnp.exp(zp), axis=-1, keepdims=True))
                             ).astype(out_pair_ref.dtype)


# ------------------------- parameter init (deterministic) -------------------------
def _init_linear(key, din, dout):
    kw, kb = jax.random.split(key)
    bound = 1.0 / math.sqrt(din)
    w = jax.random.uniform(kw, (din, dout), jnp.float32, -bound, bound)
    b = jax.random.uniform(kb, (1, dout), jnp.float32, -bound, bound)
    return w, b


def _init_encoder(key):
    ks = jax.random.split(key, 6)
    p = {}
    p['wq'], p['bq'] = _init_linear(ks[0], HIDDEN, HIDDEN)
    p['wk'], p['bk'] = _init_linear(ks[1], HIDDEN, HIDDEN)
    p['wv'], p['bv'] = _init_linear(ks[2], HIDDEN, HIDDEN)
    p['wo'], p['bo'] = _init_linear(ks[3], HIDDEN, HIDDEN)
    p['w1'], p['b1'] = _init_linear(ks[4], HIDDEN, FFN)
    p['w2'], p['b2'] = _init_linear(ks[5], FFN, HIDDEN)
    p['g1'], p['be1'] = jnp.ones((1, HIDDEN), jnp.float32), jnp.zeros((1, HIDDEN), jnp.float32)
    p['g2'], p['be2'] = jnp.ones((1, HIDDEN), jnp.float32), jnp.zeros((1, HIDDEN), jnp.float32)
    return p


def init_params(key):
    ks = iter(jax.random.split(key, 16))
    params = {'compress1': _init_linear(next(ks), EMBED_LEN, EMB_HIDDEN1),
              'compress2': _init_linear(next(ks), EMB_HIDDEN1, EMB_HIDDEN2)}
    for t in TASKS:
        params['enc_' + t] = _init_encoder(next(ks))
    for t, c in HEAD_CLASSES.items():
        params['fc_' + t] = _init_linear(next(ks), HIDDEN, c)
    params['fc_msr_pair'] = _init_linear(next(ks), 2 * HIDDEN, 2)
    return params


def pack_params(params):
    """Stack the 7 task encoders' weights along a leading task axis (fused QKV),
    store all weight matrices in bf16, pad task heads to lane-dense CPAD width, and
    pack all 1-row bias/LN vectors into two slabs (per-task and shared)."""
    bf16 = jnp.bfloat16
    pk = {}
    wc1, bc1 = params['compress1']
    wc2, bc2 = params['compress2']
    pk['wc1'], pk['wc2'] = wc1.astype(bf16), wc2.astype(bf16)

    def stack(name):
        return jnp.stack([params['enc_' + t][name] for t in TASKS], axis=0)

    pk['wqkv'] = jnp.concatenate([stack('wq'), stack('wk'), stack('wv')], -1).astype(bf16)
    pk['wo'] = stack('wo').astype(bf16)
    pk['w1'] = stack('w1').astype(bf16)
    pk['w2'] = stack('w2').astype(bf16)

    # padded per-task field heads: zero weights / -1e9 bias in padded class columns
    wh = jnp.zeros((NUM_TASKS, HIDDEN, CPAD), jnp.float32)
    bh = jnp.full((NUM_TASKS, CPAD), NEG_INF, jnp.float32)
    for ti, t in enumerate(TASKS):
        if t == 'msr_pair':
            continue  # dummy slot; real msr_pair head is the shared pair head below
        w, b = params['fc_' + t]
        c = w.shape[1]
        wh = wh.at[ti, :, :c].set(w)
        bh = bh.at[ti, :c].set(b[0])
    pk['whead'] = wh.astype(bf16)

    # per-task bias/LN slab (f32, math happens post-accumulation)
    def row(stacked, width):               # (T,1,width) -> (T,128) zero padded
        v = jnp.zeros((NUM_TASKS, CPAD), jnp.float32)
        return v.at[:, :width].set(stacked[:, 0, :])

    bqkv = jnp.concatenate([stack('bq'), stack('bk'), stack('bv')], axis=-1)  # (T,1,96)
    rows = [row(bqkv, 3 * HIDDEN), row(stack('bo'), HIDDEN), row(stack('g1'), HIDDEN),
            row(stack('be1'), HIDDEN), row(stack('b1'), FFN), row(stack('b2'), HIDDEN),
            row(stack('g2'), HIDDEN), row(stack('be2'), HIDDEN), bh]
    assert len(rows) == TVEC_ROWS
    pk['tvec'] = jnp.stack(rows, axis=1)    # (T, 9, 128) f32

    # shared pair head + shared compress biases
    wp, bp = params['fc_msr_pair']
    pk['wpair'] = jnp.zeros((2 * HIDDEN, CPAD), jnp.float32).at[:, :2].set(wp).astype(bf16)
    sv = jnp.zeros((SVEC_ROWS, CPAD), jnp.float32)
    sv = sv.at[R_BC1, :EMB_HIDDEN1].set(bc1[0])
    sv = sv.at[R_BC2, :HIDDEN].set(bc2[0])
    sv = sv.at[R_BPAIR].set(jnp.full((CPAD,), NEG_INF, jnp.float32).at[:2].set(bp[0]))
    pk['svec'] = sv
    return pk


# ------------------------- Metadata2.forward -------------------------
@jax.jit
def metadata2_forward(pk, semantic_embeds, mask, msr_pair_idx):
    B, S, E = semantic_embeds.shape
    P = msr_pair_idx.shape[1]

    BT = max(1, min(B, BLOCK_ROWS // max(S, 1)))   # samples per grid step
    NB = -(-B // BT)                               # number of batch tiles
    Bp = NB * BT
    M = BT * S
    pad = Bp - B

    x, msk, idx = semantic_embeds, mask, msr_pair_idx
    if pad:
        x = jnp.pad(x, ((0, pad), (0, 0), (0, 0)))
        msk = jnp.pad(msk, ((0, pad), (0, 0)))
        idx = jnp.pad(idx, ((0, pad), (0, 0), (0, 0)))

    # batch-tiled, bf16 activations and per-tile additive key-mask bias
    x_tiles = x.astype(jnp.bfloat16).reshape(NB, M, E)
    key_bias = jnp.where(msk > 0, 0.0, NEG_INF).astype(jnp.float32).reshape(NB, 1, M)
    # block-diagonal same-sample additive mask (identical for every tile/task)
    sample_id = jnp.arange(M, dtype=jnp.int32) // S
    blockmask = jnp.where(sample_id[:, None] == sample_id[None, :],
                          0.0, NEG_INF).astype(jnp.float32)
    # pair gather row ids within the flattened tile (clamped -> never out of range)
    idx = jnp.clip(idx.astype(jnp.int32), 0, S - 1)
    idx = idx + (jnp.arange(Bp, dtype=jnp.int32) % BT)[:, None, None] * S
    idx_tiles = idx.reshape(NB, BT * P, 2)

    def shared(a):   # full-array block, same for every grid step (DMA'd once)
        return pl.BlockSpec(a.shape, lambda t, b: (0,) * a.ndim)

    def tasked(a):   # leading task axis selected by grid index t (DMA'd 7x total)
        return pl.BlockSpec((None,) + a.shape[1:],
                            lambda t, b: (t,) + (0,) * (a.ndim - 1))

    in_specs = [
        pl.BlockSpec((None, M, E), lambda t, b: (b, 0, 0)),          # x tile
        pl.BlockSpec((None, 1, M), lambda t, b: (b, 0, 0)),          # key mask bias
        shared(blockmask),                                           # same-sample mask
        pl.BlockSpec((None, BT * P, 2), lambda t, b: (b, 0, 0)),     # pair row ids
        shared(pk['wc1']), shared(pk['wc2']), shared(pk['svec']),
        tasked(pk['wqkv']), tasked(pk['wo']), tasked(pk['w1']), tasked(pk['w2']),
        tasked(pk['whead']), tasked(pk['tvec']),
        shared(pk['wpair']),
    ]
    out_specs = (
        pl.BlockSpec((None, None, M, CPAD), lambda t, b: (t, b, 0, 0)),
        pl.BlockSpec((None, None, BT * P, CPAD), lambda t, b: (t, b, 0, 0)),
    )
    out_shape = (
        jax.ShapeDtypeStruct((NUM_TASKS, NB, M, CPAD), jnp.float32),
        jax.ShapeDtypeStruct((NUM_TASKS, NB, BT * P, CPAD), jnp.float32),
    )

    out_field, out_pair = pl.pallas_call(
        _fused_kernel,
        out_shape=out_shape,
        grid_spec=pltpu.PrefetchScalarGridSpec(
            num_scalar_prefetch=0,
            grid=(NUM_TASKS, NB),      # task outer, batch-tile innermost
            in_specs=in_specs,
            out_specs=out_specs),
        compiler_params=pltpu.CompilerParams(
            dimension_semantics=("parallel", "parallel")),
    )(x_tiles, key_bias, blockmask, idx_tiles,
      pk['wc1'], pk['wc2'], pk['svec'],
      pk['wqkv'], pk['wo'], pk['w1'], pk['w2'], pk['whead'], pk['tvec'],
      pk['wpair'])

    of = out_field.reshape(NUM_TASKS, Bp, S, CPAD)[:, :B]
    op = out_pair[PAIR_TASK_IDX].reshape(Bp, P, CPAD)[:B, :, :2]

    msr_res       = of[0, :, :, :HEAD_CLASSES['msr']]
    agg_score_res = of[1, :, :, :HEAD_CLASSES['agg_score']]
    dim_score_res = of[2, :, :, :HEAD_CLASSES['dim_score']]
    msr_score_res = of[3, :, :, :HEAD_CLASSES['msr_score']]
    key_score_res = of[4, :, :, :HEAD_CLASSES['key_score']]
    msr_type_res  = of[6, :, :, :HEAD_CLASSES['msr_type']]

    # TODO(synk): MODE2LOSS['general'] not available; assume all 7 tasks kept (no zeroing).
    # Return order matches the PyTorch module:
    # [msr, agg_score, msr_score, dim_score, key_score, msr_pair, msr_type]
    return [msr_res, agg_score_res, msr_score_res, dim_score_res,
            key_score_res, op, msr_type_res]


if __name__ == "__main__":
    key = jax.random.PRNGKey(0)
    kp, kx, kidx = jax.random.split(key, 3)

    B, S, P = 2, 8, 4
    params = init_params(kp)
    packed = pack_params(params)          # one-time offline packing, outside the hot path
    semantic_embeds = jax.random.normal(kx, (B, S, EMBED_LEN), jnp.float32)
    mask = jnp.ones((B, S), jnp.float32).at[:, S - 2:].set(0.0)   # last 2 fields padded
    msr_pair_idx = jax.random.randint(kidx, (B, P, 2), 0, S - 2, dtype=jnp.int32)

    outs = metadata2_forward(packed, semantic_embeds, mask, msr_pair_idx)
    outs = jax.block_until_ready(outs)

    assert outs[0].shape == (B, S, 2)               # msr
    assert outs[1].shape == (B, S, 9)               # agg_score
    assert outs[2].shape == (B, S, 2)               # msr_score
    assert outs[3].shape == (B, S, 2)               # dim_score
    assert outs[4].shape == (B, S, 2)               # key_score
    assert outs[5].shape == (B, P, 2)               # msr_pair
    assert outs[6].shape == (B, S, N_SUBCATEGORY)   # msr_type
    assert all(bool(jnp.all(jnp.isfinite(o))) for o in outs)
    print("KERNEL_OK")
</pallas_src>

<mosaic_0001>
module attributes {stable_mosaic.version = 11 : i64} {
  func.func @_fused_kernel(%arg0: i32, %arg1: i32, %arg2: memref<1x16x32xbf16, #tpu.memory_space<vmem>>, %arg3: memref<1x1x16xf32, #tpu.memory_space<vmem>>, %arg4: memref<16x16xf32, #tpu.memory_space<vmem>>, %arg5: memref<1x8x2xi32, #tpu.memory_space<vmem>>, %arg6: memref<32x32xbf16, #tpu.memory_space<vmem>>, %arg7: memref<32x32xbf16, #tpu.memory_space<vmem>>, %arg8: memref<3x128xf32, #tpu.memory_space<vmem>>, %arg9: memref<1x32x96xbf16, #tpu.memory_space<vmem>>, %arg10: memref<1x32x32xbf16, #tpu.memory_space<vmem>>, %arg11: memref<1x32x64xbf16, #tpu.memory_space<vmem>>, %arg12: memref<1x64x32xbf16, #tpu.memory_space<vmem>>, %arg13: memref<1x32x128xbf16, #tpu.memory_space<vmem>>, %arg14: memref<1x9x128xf32, #tpu.memory_space<vmem>>, %arg15: memref<64x128xbf16, #tpu.memory_space<vmem>>, %arg16: memref<1x1x16x128xf32, #tpu.memory_space<vmem>>, %arg17: memref<1x1x8x128xf32, #tpu.memory_space<vmem>>) attributes {dimension_semantics = [#tpu.dimension_semantics<parallel>, #tpu.dimension_semantics<parallel>], iteration_bounds = array<i64: 7, 1>, scalar_prefetch = 0 : i64, scratch_operands = 0 : i64, tpu.core_type = #tpu.core_type<tc>, window_params = [{transform_indices = @transform_0, window_bounds = array<i64: 1, 16, 32>}, {transform_indices = @transform_1, window_bounds = array<i64: 1, 1, 16>}, {pipeline_mode = #tpu.pipeline_mode<synchronous>, transform_indices = @transform_2, window_bounds = array<i64: 16, 16>}, {transform_indices = @transform_3, window_bounds = array<i64: 1, 8, 2>}, {pipeline_mode = #tpu.pipeline_mode<synchronous>, transform_indices = @transform_4, window_bounds = array<i64: 32, 32>}, {pipeline_mode = #tpu.pipeline_mode<synchronous>, transform_indices = @transform_5, window_bounds = array<i64: 32, 32>}, {pipeline_mode = #tpu.pipeline_mode<synchronous>, transform_indices = @transform_6, window_bounds = array<i64: 3, 128>}, {transform_indices = @transform_7, window_bounds = array<i64: 1, 32, 96>}, {transform_indices = @transform_8, window_bounds = array<i64: 1, 32, 32>}, {transform_indices = @transform_9, window_bounds = array<i64: 1, 32, 64>}, {transform_indices = @transform_10, window_bounds = array<i64: 1, 64, 32>}, {transform_indices = @transform_11, window_bounds = array<i64: 1, 32, 128>}, {transform_indices = @transform_12, window_bounds = array<i64: 1, 9, 128>}, {pipeline_mode = #tpu.pipeline_mode<synchronous>, transform_indices = @transform_13, window_bounds = array<i64: 64, 128>}, {transform_indices = @transform_14, window_bounds = array<i64: 1, 1, 16, 128>}, {transform_indices = @transform_15, window_bounds = array<i64: 1, 1, 8, 128>}]} {
    %c0 = arith.constant 0 : index
    %c0_0 = arith.constant 0 : index
    %0 = vector.load %arg8[%c0, %c0_0] : memref<3x128xf32, #tpu.memory_space<vmem>>, vector<3x128xf32>
    %c0_1 = arith.constant 0 : index
    %c0_2 = arith.constant 0 : index
    %c0_3 = arith.constant 0 : index
    %1 = vector.load %arg14[%c0_1, %c0_2, %c0_3] : memref<1x9x128xf32, #tpu.memory_space<vmem>>, vector<1x9x128xf32>
    %2 = vector.shape_cast %1 : vector<1x9x128xf32> to vector<9x128xf32>
    %3 = vector.extract_strided_slice %0 {offsets = [0, 0], sizes = [1, 32], strides = [1, 1]} : vector<3x128xf32> to vector<1x32xf32>
    %4 = vector.extract_strided_slice %0 {offsets = [1, 0], sizes = [1, 32], strides = [1, 1]} : vector<3x128xf32> to vector<1x32xf32>
    %5 = vector.extract_strided_slice %0 {offsets = [2, 0], sizes = [1, 128], strides = [1, 1]} : vector<3x128xf32> to vector<1x128xf32>
    %6 = vector.extract_strided_slice %2 {offsets = [0, 0], sizes = [1, 96], strides = [1, 1]} : vector<9x128xf32> to vector<1x96xf32>
    %7 = vector.extract_strided_slice %2 {offsets = [1, 0], sizes = [1, 32], strides = [1, 1]} : vector<9x128xf32> to vector<1x32xf32>
    %8 = vector.extract_strided_slice %2 {offsets = [2, 0], sizes = [1, 32], strides = [1, 1]} : vector<9x128xf32> to vector<1x32xf32>
    %9 = vector.extract_strided_slice %2 {offsets = [3, 0], sizes = [1, 32], strides = [1, 1]} : vector<9x128xf32> to vector<1x32xf32>
    %10 = vector.extract_strided_slice %2 {offsets = [4, 0], sizes = [1, 64], strides = [1, 1]} : vector<9x128xf32> to vector<1x64xf32>
    %11 = vector.extract_strided_slice %2 {offsets = [5, 0], sizes = [1, 32], strides = [1, 1]} : vector<9x128xf32> to vector<1x32xf32>
    %12 = vector.extract_strided_slice %2 {offsets = [6, 0], sizes = [1, 32], strides = [1, 1]} : vector<9x128xf32> to vector<1x32xf32>
    %13 = vector.extract_strided_slice %2 {offsets = [7, 0], sizes = [1, 32], strides = [1, 1]} : vector<9x128xf32> to vector<1x32xf32>
    %14 = vector.extract_strided_slice %2 {offsets = [8, 0], sizes = [1, 128], strides = [1, 1]} : vector<9x128xf32> to vector<1x128xf32>
    %c0_4 = arith.constant 0 : index
    %c0_5 = arith.constant 0 : index
    %c0_6 = arith.constant 0 : index
    %15 = vector.load %arg2[%c0_4, %c0_5, %c0_6] : memref<1x16x32xbf16, #tpu.memory_space<vmem>>, vector<1x16x32xbf16>
    %16 = vector.shape_cast %15 : vector<1x16x32xbf16> to vector<16x32xbf16>
    %c0_7 = arith.constant 0 : index
    %c0_8 = arith.constant 0 : index
    %17 = vector.load %arg6[%c0_7, %c0_8] : memref<32x32xbf16, #tpu.memory_space<vmem>>, vector<32x32xbf16>
    %cst = arith.constant dense<0.000000e+00> : vector<16x32xf32>
    %18 = tpu.matmul %16, %17, %cst {dimension_numbers = #tpu.dot_dimension_numbers<[1], [0], [0], [1], [0, 0, 1, 1], [], []>} : vector<16x32xbf16>, vector<32x32xbf16>, vector<16x32xf32> -> vector<16x32xf32>
    %19 = vector.broadcast %3 : vector<1x32xf32> to vector<16x32xf32>
    %20 = arith.addf %18, %19 : vector<16x32xf32>
    %21 = arith.truncf %20 : vector<16x32xf32> to vector<16x32xbf16>
    %c0_9 = arith.constant 0 : index
    %c0_10 = arith.constant 0 : index
    %22 = vector.load %arg7[%c0_9, %c0_10] : memref<32x32xbf16, #tpu.memory_space<vmem>>, vector<32x32xbf16>
    %cst_11 = arith.constant dense<0.000000e+00> : vector<16x32xf32>
    %23 = tpu.matmul %21, %22, %cst_11 {dimension_numbers = #tpu.dot_dimension_numbers<[1], [0], [0], [1], [0, 0, 1, 1], [], []>} : vector<16x32xbf16>, vector<32x32xbf16>, vector<16x32xf32> -> vector<16x32xf32>
    %24 = vector.broadcast %4 : vector<1x32xf32> to vector<16x32xf32>
    %25 = arith.addf %23, %24 : vector<16x32xf32>
    %c0_12 = arith.constant 0 : index
    %c0_13 = arith.constant 0 : index
    %26 = vector.load %arg4[%c0_12, %c0_13] : memref<16x16xf32, #tpu.memory_space<vmem>>, vector<16x16xf32>
    %c0_14 = arith.constant 0 : index
    %c0_15 = arith.constant 0 : index
    %c0_16 = arith.constant 0 : index
    %27 = vector.load %arg3[%c0_14, %c0_15, %c0_16] : memref<1x1x16xf32, #tpu.memory_space<vmem>>, vector<1x1x16xf32>
    %28 = vector.shape_cast %27 : vector<1x1x16xf32> to vector<1x16xf32>
    %29 = vector.broadcast %28 : vector<1x16xf32> to vector<16x16xf32>
    %30 = arith.addf %26, %29 : vector<16x16xf32>
    %31 = arith.truncf %25 : vector<16x32xf32> to vector<16x32xbf16>
    %c0_17 = arith.constant 0 : index
    %c0_18 = arith.constant 0 : index
    %c0_19 = arith.constant 0 : index
    %32 = vector.load %arg9[%c0_17, %c0_18, %c0_19] : memref<1x32x96xbf16, #tpu.memory_space<vmem>>, vector<1x32x96xbf16>
    %33 = vector.shape_cast %32 : vector<1x32x96xbf16> to vector<32x96xbf16>
    %cst_20 = arith.constant dense<0.000000e+00> : vector<16x96xf32>
    %34 = tpu.matmul %31, %33, %cst_20 {dimension_numbers = #tpu.dot_dimension_numbers<[1], [0], [0], [1], [0, 0, 1, 1], [], []>} : vector<16x32xbf16>, vector<32x96xbf16>, vector<16x96xf32> -> vector<16x96xf32>
    %35 = vector.broadcast %6 : vector<1x96xf32> to vector<16x96xf32>
    %36 = arith.addf %34, %35 : vector<16x96xf32>
    %37 = arith.truncf %36 : vector<16x96xf32> to vector<16x96xbf16>
    %c0_21 = arith.constant 0 : index
    %c0_22 = arith.constant 0 : index
    %c0_23 = arith.constant 0 : index
    %38 = vector.load %arg10[%c0_21, %c0_22, %c0_23] : memref<1x32x32xbf16, #tpu.memory_space<vmem>>, vector<1x32x32xbf16>
    %39 = vector.shape_cast %38 : vector<1x32x32xbf16> to vector<32x32xbf16>
    %cst_24 = arith.constant 0.000000e+00 : f32
    %40 = vector.broadcast %cst_24 : f32 to vector<16x32xf32>
    %41 = vector.extract_strided_slice %37 {offsets = [0, 0], sizes = [16, 8], strides = [1, 1]} : vector<16x96xbf16> to vector<16x8xbf16>
    %42 = vector.extract_strided_slice %37 {offsets = [0, 32], sizes = [16, 8], strides = [1, 1]} : vector<16x96xbf16> to vector<16x8xbf16>
    %43 = vector.extract_strided_slice %37 {offsets = [0, 64], sizes = [16, 8], strides = [1, 1]} : vector<16x96xbf16> to vector<16x8xbf16>
    %cst_25 = arith.constant dense<0.000000e+00> : vector<16x16xf32>
    %44 = tpu.matmul %41, %42, %cst_25 {dimension_numbers = #tpu.dot_dimension_numbers<[1], [1], [0], [0], [0, 0, 1, 0], [], []>} : vector<16x8xbf16>, vector<16x8xbf16>, vector<16x16xf32> -> vector<16x16xf32>
    %cst_26 = arith.constant 0.353553385 : f32
    %45 = vector.broadcast %cst_26 : f32 to vector<16x16xf32>
    %46 = arith.mulf %44, %45 : vector<16x16xf32>
    %47 = arith.addf %46, %30 : vector<16x16xf32>
    %cst_27 = arith.constant dense<0xFF800000> : vector<16xf32>
    %48 = vector.multi_reduction <maximumf>, %47, %cst_27 [1] : vector<16x16xf32> to vector<16xf32>
    %49 = vector.shape_cast %48 : vector<16xf32> to vector<16x1xf32>
    %50 = vector.broadcast %49 : vector<16x1xf32> to vector<16x16xf32>
    %51 = arith.subf %47, %50 : vector<16x16xf32>
    %52 = math.exp %51 : vector<16x16xf32>
    %cst_28 = arith.constant dense<0.000000e+00> : vector<16xf32>
    %53 = vector.multi_reduction <add>, %52, %cst_28 [1] : vector<16x16xf32> to vector<16xf32>
    %54 = vector.shape_cast %53 : vector<16xf32> to vector<16x1xf32>
    %55 = tpu.reciprocal %54 {approx = true} : vector<16x1xf32> -> vector<16x1xf32>
    %56 = vector.broadcast %55 : vector<16x1xf32> to vector<16x16xf32>
    %57 = arith.mulf %52, %56 : vector<16x16xf32>
    %58 = arith.truncf %57 : vector<16x16xf32> to vector<16x16xbf16>
    %cst_29 = arith.constant dense<0.000000e+00> : vector<16x8xf32>
    %59 = tpu.matmul %58, %43, %cst_29 {dimension_numbers = #tpu.dot_dimension_numbers<[1], [0], [0], [1], [0, 0, 1, 1], [], []>} : vector<16x16xbf16>, vector<16x8xbf16>, vector<16x8xf32> -> vector<16x8xf32>
    %60 = arith.truncf %59 : vector<16x8xf32> to vector<16x8xbf16>
    %61 = vector.extract_strided_slice %39 {offsets = [0, 0], sizes = [8, 32], strides = [1, 1]} : vector<32x32xbf16> to vector<8x32xbf16>
    %cst_30 = arith.constant dense<0.000000e+00> : vector<16x32xf32>
    %62 = tpu.matmul %60, %61, %cst_30 {dimension_numbers = #tpu.dot_dimension_numbers<[1], [0], [0], [1], [0, 0, 1, 1], [], []>} : vector<16x8xbf16>, vector<8x32xbf16>, vector<16x32xf32> -> vector<16x32xf32>
    %63 = arith.addf %40, %62 : vector<16x32xf32>
    %64 = vector.extract_strided_slice %37 {offsets = [0, 8], sizes = [16, 8], strides = [1, 1]} : vector<16x96xbf16> to vector<16x8xbf16>
    %65 = vector.extract_strided_slice %37 {offsets = [0, 40], sizes = [16, 8], strides = [1, 1]} : vector<16x96xbf16> to vector<16x8xbf16>
    %66 = vector.extract_strided_slice %37 {offsets = [0, 72], sizes = [16, 8], strides = [1, 1]} : vector<16x96xbf16> to vector<16x8xbf16>
    %cst_31 = arith.constant dense<0.000000e+00> : vector<16x16xf32>
    %67 = tpu.matmul %64, %65, %cst_31 {dimension_numbers = #tpu.dot_dimension_numbers<[1], [1], [0], [0], [0, 0, 1, 0], [], []>} : vector<16x8xbf16>, vector<16x8xbf16>, vector<16x16xf32> -> vector<16x16xf32>
    %cst_32 = arith.constant 0.353553385 : f32
    %68 = vector.broadcast %cst_32 : f32 to vector<16x16xf32>
    %69 = arith.mulf %67, %68 : vector<16x16xf32>
    %70 = arith.addf %69, %30 : vector<16x16xf32>
    %cst_33 = arith.constant dense<0xFF800000> : vector<16xf32>
    %71 = vector.multi_reduction <maximumf>, %70, %cst_33 [1] : vector<16x16xf32> to vector<16xf32>
    %72 = vector.shape_cast %71 : vector<16xf32> to vector<16x1xf32>
    %73 = vector.broadcast %72 : vector<16x1xf32> to vector<16x16xf32>
    %74 = arith.subf %70, %73 : vector<16x16xf32>
    %75 = math.exp %74 : vector<16x16xf32>
    %cst_34 = arith.constant dense<0.000000e+00> : vector<16xf32>
    %76 = vector.multi_reduction <add>, %75, %cst_34 [1] : vector<16x16xf32> to vector<16xf32>
    %77 = vector.shape_cast %76 : vector<16xf32> to vector<16x1xf32>
    %78 = tpu.reciprocal %77 {approx = true} : vector<16x1xf32> -> vector<16x1xf32>
    %79 = vector.broadcast %78 : vector<16x1xf32> to vector<16x16xf32>
    %80 = arith.mulf %75, %79 : vector<16x16xf32>
    %81 = arith.truncf %80 : vector<16x16xf32> to vector<16x16xbf16>
    %cst_35 = arith.constant dense<0.000000e+00> : vector<16x8xf32>
    %82 = tpu.matmul %81, %66, %cst_35 {dimension_numbers = #tpu.dot_dimension_numbers<[1], [0], [0], [1], [0, 0, 1, 1], [], []>} : vector<16x16xbf16>, vector<16x8xbf16>, vector<16x8xf32> -> vector<16x8xf32>
    %83 = arith.truncf %82 : vector<16x8xf32> to vector<16x8xbf16>
    %84 = vector.extract_strided_slice %39 {offsets = [8, 0], sizes = [8, 32], strides = [1, 1]} : vector<32x32xbf16> to vector<8x32xbf16>
    %cst_36 = arith.constant dense<0.000000e+00> : vector<16x32xf32>
    %85 = tpu.matmul %83, %84, %cst_36 {dimension_numbers = #tpu.dot_dimension_numbers<[1], [0], [0], [1], [0, 0, 1, 1], [], []>} : vector<16x8xbf16>, vector<8x32xbf16>, vector<16x32xf32> -> vector<16x32xf32>
    %86 = arith.addf %63, %85 : vector<16x32xf32>
    %87 = vector.extract_strided_slice %37 {offsets = [0, 16], sizes = [16, 8], strides = [1, 1]} : vector<16x96xbf16> to vector<16x8xbf16>
    %88 = vector.extract_strided_slice %37 {offsets = [0, 48], sizes = [16, 8], strides = [1, 1]} : vector<16x96xbf16> to vector<16x8xbf16>
    %89 = vector.extract_strided_slice %37 {offsets = [0, 80], sizes = [16, 8], strides = [1, 1]} : vector<16x96xbf16> to vector<16x8xbf16>
    %cst_37 = arith.constant dense<0.000000e+00> : vector<16x16xf32>
    %90 = tpu.matmul %87, %88, %cst_37 {dimension_numbers = #tpu.dot_dimension_numbers<[1], [1], [0], [0], [0, 0, 1, 0], [], []>} : vector<16x8xbf16>, vector<16x8xbf16>, vector<16x16xf32> -> vector<16x16xf32>
    %cst_38 = arith.constant 0.353553385 : f32
    %91 = vector.broadcast %cst_38 : f32 to vector<16x16xf32>
    %92 = arith.mulf %90, %91 : vector<16x16xf32>
    %93 = arith.addf %92, %30 : vector<16x16xf32>
    %cst_39 = arith.constant dense<0xFF800000> : vector<16xf32>
    %94 = vector.multi_reduction <maximumf>, %93, %cst_39 [1] : vector<16x16xf32> to vector<16xf32>
    %95 = vector.shape_cast %94 : vector<16xf32> to vector<16x1xf32>
    %96 = vector.broadcast %95 : vector<16x1xf32> to vector<16x16xf32>
    %97 = arith.subf %93, %96 : vector<16x16xf32>
    %98 = math.exp %97 : vector<16x16xf32>
    %cst_40 = arith.constant dense<0.000000e+00> : vector<16xf32>
    %99 = vector.multi_reduction <add>, %98, %cst_40 [1] : vector<16x16xf32> to vector<16xf32>
    %100 = vector.shape_cast %99 : vector<16xf32> to vector<16x1xf32>
    %101 = tpu.reciprocal %100 {approx = true} : vector<16x1xf32> -> vector<16x1xf32>
    %102 = vector.broadcast %101 : vector<16x1xf32> to vector<16x16xf32>
    %103 = arith.mulf %98, %102 : vector<16x16xf32>
    %104 = arith.truncf %103 : vector<16x16xf32> to vector<16x16xbf16>
    %cst_41 = arith.constant dense<0.000000e+00> : vector<16x8xf32>
    %105 = tpu.matmul %104, %89, %cst_41 {dimension_numbers = #tpu.dot_dimension_numbers<[1], [0], [0], [1], [0, 0, 1, 1], [], []>} : vector<16x16xbf16>, vector<16x8xbf16>, vector<16x8xf32> -> vector<16x8xf32>
    %106 = arith.truncf %105 : vector<16x8xf32> to vector<16x8xbf16>
    %107 = vector.extract_strided_slice %39 {offsets = [16, 0], sizes = [8, 32], strides = [1, 1]} : vector<32x32xbf16> to vector<8x32xbf16>
    %cst_42 = arith.constant dense<0.000000e+00> : vector<16x32xf32>
    %108 = tpu.matmul %106, %107, %cst_42 {dimension_numbers = #tpu.dot_dimension_numbers<[1], [0], [0], [1], [0, 0, 1, 1], [], []>} : vector<16x8xbf16>, vector<8x32xbf16>, vector<16x32xf32> -> vector<16x32xf32>
    %109 = arith.addf %86, %108 : vector<16x32xf32>
    %110 = vector.extract_strided_slice %37 {offsets = [0, 24], sizes = [16, 8], strides = [1, 1]} : vector<16x96xbf16> to vector<16x8xbf16>
    %111 = vector.extract_strided_slice %37 {offsets = [0, 56], sizes = [16, 8], strides = [1, 1]} : vector<16x96xbf16> to vector<16x8xbf16>
    %112 = vector.extract_strided_slice %37 {offsets = [0, 88], sizes = [16, 8], strides = [1, 1]} : vector<16x96xbf16> to vector<16x8xbf16>
    %cst_43 = arith.constant dense<0.000000e+00> : vector<16x16xf32>
    %113 = tpu.matmul %110, %111, %cst_43 {dimension_numbers = #tpu.dot_dimension_numbers<[1], [1], [0], [0], [0, 0, 1, 0], [], []>} : vector<16x8xbf16>, vector<16x8xbf16>, vector<16x16xf32> -> vector<16x16xf32>
    %cst_44 = arith.constant 0.353553385 : f32
    %114 = vector.broadcast %cst_44 : f32 to vector<16x16xf32>
    %115 = arith.mulf %113, %114 : vector<16x16xf32>
    %116 = arith.addf %115, %30 : vector<16x16xf32>
    %cst_45 = arith.constant dense<0xFF800000> : vector<16xf32>
    %117 = vector.multi_reduction <maximumf>, %116, %cst_45 [1] : vector<16x16xf32> to vector<16xf32>
    %118 = vector.shape_cast %117 : vector<16xf32> to vector<16x1xf32>
    %119 = vector.broadcast %118 : vector<16x1xf32> to vector<16x16xf32>
    %120 = arith.subf %116, %119 : vector<16x16xf32>
    %121 = math.exp %120 : vector<16x16xf32>
    %cst_46 = arith.constant dense<0.000000e+00> : vector<16xf32>
    %122 = vector.multi_reduction <add>, %121, %cst_46 [1] : vector<16x16xf32> to vector<16xf32>
    %123 = vector.shape_cast %122 : vector<16xf32> to vector<16x1xf32>
    %124 = tpu.reciprocal %123 {approx = true} : vector<16x1xf32> -> vector<16x1xf32>
    %125 = vector.broadcast %124 : vector<16x1xf32> to vector<16x16xf32>
    %126 = arith.mulf %121, %125 : vector<16x16xf32>
    %127 = arith.truncf %126 : vector<16x16xf32> to vector<16x16xbf16>
    %cst_47 = arith.constant dense<0.000000e+00> : vector<16x8xf32>
    %128 = tpu.matmul %127, %112, %cst_47 {dimension_numbers = #tpu.dot_dimension_numbers<[1], [0], [0], [1], [0, 0, 1, 1], [], []>} : vector<16x16xbf16>, vector<16x8xbf16>, vector<16x8xf32> -> vector<16x8xf32>
    %129 = arith.truncf %128 : vector<16x8xf32> to vector<16x8xbf16>
    %130 = vector.extract_strided_slice %39 {offsets = [24, 0], sizes = [8, 32], strides = [1, 1]} : vector<32x32xbf16> to vector<8x32xbf16>
    %cst_48 = arith.constant dense<0.000000e+00> : vector<16x32xf32>
    %131 = tpu.matmul %129, %130, %cst_48 {dimension_numbers = #tpu.dot_dimension_numbers<[1], [0], [0], [1], [0, 0, 1, 1], [], []>} : vector<16x8xbf16>, vector<8x32xbf16>, vector<16x32xf32> -> vector<16x32xf32>
    %132 = arith.addf %109, %131 : vector<16x32xf32>
    %133 = vector.broadcast %7 : vector<1x32xf32> to vector<16x32xf32>
    %134 = arith.addf %132, %133 : vector<16x32xf32>
    %135 = arith.addf %25, %134 : vector<16x32xf32>
    %cst_49 = arith.constant dense<0.000000e+00> : vector<16xf32>
    %136 = vector.multi_reduction <add>, %135, %cst_49 [1] : vector<16x32xf32> to vector<16xf32>
    %137 = vector.shape_cast %136 : vector<16xf32> to vector<16x1xf32>
    %cst_50 = arith.constant 3.200000e+01 : f32
    %138 = vector.broadcast %cst_50 : f32 to vector<16x1xf32>
    %139 = arith.divf %137, %138 : vector<16x1xf32>
    %140 = arith.mulf %135, %135 : vector<16x32xf32>
    %cst_51 = arith.constant dense<0.000000e+00> : vector<16xf32>
    %141 = vector.multi_reduction <add>, %140, %cst_51 [1] : vector<16x32xf32> to vector<16xf32>
    %142 = vector.shape_cast %141 : vector<16xf32> to vector<16x1xf32>
    %cst_52 = arith.constant 3.200000e+01 : f32
    %143 = vector.broadcast %cst_52 : f32 to vector<16x1xf32>
    %144 = arith.divf %142, %143 : vector<16x1xf32>
    %145 = arith.mulf %139, %139 : vector<16x1xf32>
    %146 = arith.subf %144, %145 : vector<16x1xf32>
    %147 = vector.broadcast %139 : vector<16x1xf32> to vector<16x32xf32>
    %148 = arith.subf %135, %147 : vector<16x32xf32>
    %cst_53 = arith.constant 9.99999974E-6 : f32
    %149 = vector.broadcast %cst_53 : f32 to vector<16x1xf32>
    %150 = arith.addf %146, %149 : vector<16x1xf32>
    %151 = math.rsqrt %150 : vector<16x1xf32>
    %152 = vector.broadcast %151 : vector<16x1xf32> to vector<16x32xf32>
    %153 = arith.mulf %148, %152 : vector<16x32xf32>
    %154 = vector.broadcast %8 : vector<1x32xf32> to vector<16x32xf32>
    %155 = arith.mulf %153, %154 : vector<16x32xf32>
    %156 = vector.broadcast %9 : vector<1x32xf32> to vector<16x32xf32>
    %157 = arith.addf %155, %156 : vector<16x32xf32>
    %158 = arith.truncf %157 : vector<16x32xf32> to vector<16x32xbf16>
    %c0_54 = arith.constant 0 : index
    %c0_55 = arith.constant 0 : index
    %c0_56 = arith.constant 0 : index
    %159 = vector.load %arg11[%c0_54, %c0_55, %c0_56] : memref<1x32x64xbf16, #tpu.memory_space<vmem>>, vector<1x32x64xbf16>
    %160 = vector.shape_cast %159 : vector<1x32x64xbf16> to vector<32x64xbf16>
    %cst_57 = arith.constant dense<0.000000e+00> : vector<16x64xf32>
    %161 = tpu.matmul %158, %160, %cst_57 {dimension_numbers = #tpu.dot_dimension_numbers<[1], [0], [0], [1], [0, 0, 1, 1], [], []>} : vector<16x32xbf16>, vector<32x64xbf16>, vector<16x64xf32> -> vector<16x64xf32>
    %162 = vector.broadcast %10 : vector<1x64xf32> to vector<16x64xf32>
    %163 = arith.addf %161, %162 : vector<16x64xf32>
    %cst_58 = arith.constant 0.000000e+00 : f32
    %164 = vector.broadcast %cst_58 : f32 to vector<16x64xf32>
    %165 = arith.maximumf %163, %164 : vector<16x64xf32>
    %166 = arith.truncf %165 : vector<16x64xf32> to vector<16x64xbf16>
    %c0_59 = arith.constant 0 : index
    %c0_60 = arith.constant 0 : index
    %c0_61 = arith.constant 0 : index
    %167 = vector.load %arg12[%c0_59, %c0_60, %c0_61] : memref<1x64x32xbf16, #tpu.memory_space<vmem>>, vector<1x64x32xbf16>
    %168 = vector.shape_cast %167 : vector<1x64x32xbf16> to vector<64x32xbf16>
    %cst_62 = arith.constant dense<0.000000e+00> : vector<16x32xf32>
    %169 = tpu.matmul %166, %168, %cst_62 {dimension_numbers = #tpu.dot_dimension_numbers<[1], [0], [0], [1], [0, 0, 1, 1], [], []>} : vector<16x64xbf16>, vector<64x32xbf16>, vector<16x32xf32> -> vector<16x32xf32>
    %170 = vector.broadcast %11 : vector<1x32xf32> to vector<16x32xf32>
    %171 = arith.addf %169, %170 : vector<16x32xf32>
    %172 = arith.addf %157, %171 : vector<16x32xf32>
    %cst_63 = arith.constant dense<0.000000e+00> : vector<16xf32>
    %173 = vector.multi_reduction <add>, %172, %cst_63 [1] : vector<16x32xf32> to vector<16xf32>
    %174 = vector.shape_cast %173 : vector<16xf32> to vector<16x1xf32>
    %cst_64 = arith.constant 3.200000e+01 : f32
    %175 = vector.broadcast %cst_64 : f32 to vector<16x1xf32>
    %176 = arith.divf %174, %175 : vector<16x1xf32>
    %177 = arith.mulf %172, %172 : vector<16x32xf32>
    %cst_65 = arith.constant dense<0.000000e+00> : vector<16xf32>
    %178 = vector.multi_reduction <add>, %177, %cst_65 [1] : vector<16x32xf32> to vector<16xf32>
    %179 = vector.shape_cast %178 : vector<16xf32> to vector<16x1xf32>
    %cst_66 = arith.constant 3.200000e+01 : f32
    %180 = vector.broadcast %cst_66 : f32 to vector<16x1xf32>
    %181 = arith.divf %179, %180 : vector<16x1xf32>
    %182 = arith.mulf %176, %176 : vector<16x1xf32>
    %183 = arith.subf %181, %182 : vector<16x1xf32>
    %184 = vector.broadcast %176 : vector<16x1xf32> to vector<16x32xf32>
    %185 = arith.subf %172, %184 : vector<16x32xf32>
    %cst_67 = arith.constant 9.99999974E-6 : f32
    %186 = vector.broadcast %cst_67 : f32 to vector<16x1xf32>
    %187 = arith.addf %183, %186 : vector<16x1xf32>
    %188 = math.rsqrt %187 : vector<16x1xf32>
    %189 = vector.broadcast %188 : vector<16x1xf32> to vector<16x32xf32>
    %190 = arith.mulf %185, %189 : vector<16x32xf32>
    %191 = vector.broadcast %12 : vector<1x32xf32> to vector<16x32xf32>
    %192 = arith.mulf %190, %191 : vector<16x32xf32>
    %193 = vector.broadcast %13 : vector<1x32xf32> to vector<16x32xf32>
    %194 = arith.addf %192, %193 : vector<16x32xf32>
    %195 = arith.truncf %194 : vector<16x32xf32> to vector<16x32xbf16>
    %c0_68 = arith.constant 0 : index
    %c0_69 = arith.constant 0 : index
    %c0_70 = arith.constant 0 : index
    %196 = vector.load %arg13[%c0_68, %c0_69, %c0_70] : memref<1x32x128xbf16, #tpu.memory_space<vmem>>, vector<1x32x128xbf16>
    %197 = vector.shape_cast %196 : vector<1x32x128xbf16> to vector<32x128xbf16>
    %cst_71 = arith.constant dense<0.000000e+00> : vector<16x128xf32>
    %198 = tpu.matmul %195, %197, %cst_71 {dimension_numbers = #tpu.dot_dimension_numbers<[1], [0], [0], [1], [0, 0, 1, 1], [], []>} : vector<16x32xbf16>, vector<32x128xbf16>, vector<16x128xf32> -> vector<16x128xf32>
    %199 = vector.broadcast %14 : vector<1x128xf32> to vector<16x128xf32>
    %200 = arith.addf %198, %199 : vector<16x128xf32>
    %cst_72 = arith.constant dense<0xFF800000> : vector<16xf32>
    %201 = vector.multi_reduction <maximumf>, %200, %cst_72 [1] : vector<16x128xf32> to vector<16xf32>
    %202 = vector.shape_cast %201 : vector<16xf32> to vector<16x1xf32>
    %203 = vector.broadcast %202 : vector<16x1xf32> to vector<16x128xf32>
    %204 = arith.subf %200, %203 : vector<16x128xf32>
    %205 = math.exp %204 : vector<16x128xf32>
    %cst_73 = arith.constant dense<0.000000e+00> : vector<16xf32>
    %206 = vector.multi_reduction <add>, %205, %cst_73 [1] : vector<16x128xf32> to vector<16xf32>
    %207 = vector.shape_cast %206 : vector<16xf32> to vector<16x1xf32>
    %208 = math.log %207 : vector<16x1xf32>
    %209 = vector.broadcast %208 : vector<16x1xf32> to vector<16x128xf32>
    %210 = arith.subf %204, %209 : vector<16x128xf32>
    %c0_74 = arith.constant 0 : index
    %c0_75 = arith.constant 0 : index
    %c0_76 = arith.constant 0 : index
    %c0_77 = arith.constant 0 : index
    %211 = vector.load %arg16[%c0_74, %c0_75, %c0_76, %c0_77] : memref<1x1x16x128xf32, #tpu.memory_space<vmem>>, vector<1x1x16x128xf32>
    %212 = vector.shape_cast %211 : vector<1x1x16x128xf32> to vector<16x128xf32>
    %213 = vector.shape_cast %210 : vector<16x128xf32> to vector<1x1x16x128xf32>
    tpu.vector_store %arg16[%c0_74, %c0_75, %c0_76, %c0_77], %213 {strides = array<i32>} : memref<1x1x16x128xf32, #tpu.memory_space<vmem>>, vector<1x1x16x128xf32>,
    %c5_i32 = arith.constant 5 : i32
    %214 = arith.cmpi ne, %arg0, %c5_i32 : i32
    %215 = arith.extui %214 : i1 to i32
    %c0_i32 = arith.constant 0 : i32
    %216 = arith.cmpi ne, %215, %c0_i32 : i32
    scf.if %216 {
      %cst_80 = arith.constant 0.000000e+00 : f32
      %220 = vector.broadcast %cst_80 : f32 to vector<8x128xf32>
      %c0_81 = arith.constant 0 : index
      %c0_82 = arith.constant 0 : index
      %c0_83 = arith.constant 0 : index
      %c0_84 = arith.constant 0 : index
      %221 = vector.load %arg17[%c0_81, %c0_82, %c0_83, %c0_84] : memref<1x1x8x128xf32, #tpu.memory_space<vmem>>, vector<1x1x8x128xf32>
      %222 = vector.shape_cast %221 : vector<1x1x8x128xf32> to vector<8x128xf32>
      %223 = vector.shape_cast %220 : vector<8x128xf32> to vector<1x1x8x128xf32>
      tpu.vector_store %arg17[%c0_81, %c0_82, %c0_83, %c0_84], %223 {strides = array<i32>} : memref<1x1x8x128xf32, #tpu.memory_space<vmem>>, vector<1x1x8x128xf32>,
    } else {
    }
    %c5_i32_78 = arith.constant 5 : i32
    %217 = arith.cmpi eq, %arg0, %c5_i32_78 : i32
    %218 = arith.extui %217 : i1 to i32
    %c0_i32_79 = arith.constant 0 : i32
    %219 = arith.cmpi ne, %218, %c0_i32_79 : i32
    scf.if %219 {
      %c0_80 = arith.constant 0 : index
      %c0_81 = arith.constant 0 : index
      %c0_82 = arith.constant 0 : index
      %220 = vector.load %arg5[%c0_80, %c0_81, %c0_82] : memref<1x8x2xi32, #tpu.memory_space<vmem>>, vector<1x8x2xi32>
      %221 = vector.shape_cast %220 : vector<1x8x2xi32> to vector<8x2xi32>
      %222 = tpu.iota {dimensions = array<i32: 1>} : vector<8x16xi32>
      %223 = vector.extract_strided_slice %221 {offsets = [0, 0], sizes = [8, 1], strides = [1, 1]} : vector<8x2xi32> to vector<8x1xi32>
      %224 = vector.broadcast %223 : vector<8x1xi32> to vector<8x16xi32>
      %225 = arith.cmpi eq, %222, %224 : vector<8x16xi32>
      %226 = arith.extui %225 : vector<8x16xi1> to vector<8x16xi32>
      %227 = arith.sitofp %226 : vector<8x16xi32> to vector<8x16xf32>
      %228 = vector.extract_strided_slice %221 {offsets = [0, 1], sizes = [8, 1], strides = [1, 1]} : vector<8x2xi32> to vector<8x1xi32>
      %229 = vector.broadcast %228 : vector<8x1xi32> to vector<8x16xi32>
      %230 = arith.cmpi eq, %222, %229 : vector<8x16xi32>
      %231 = arith.extui %230 : vector<8x16xi1> to vector<8x16xi32>
      %232 = arith.sitofp %231 : vector<8x16xi32> to vector<8x16xf32>
      %cst_83 = arith.constant dense<0.000000e+00> : vector<8x32xf32>
      %233 = tpu.matmul %227, %194, %cst_83 {dimension_numbers = #tpu.dot_dimension_numbers<[1], [0], [0], [1], [0, 0, 1, 1], [], []>} : vector<8x16xf32>, vector<16x32xf32>, vector<8x32xf32> -> vector<8x32xf32>
      %cst_84 = arith.constant dense<0.000000e+00> : vector<8x32xf32>
      %234 = tpu.matmul %232, %194, %cst_84 {dimension_numbers = #tpu.dot_dimension_numbers<[1], [0], [0], [1], [0, 0, 1, 1], [], []>} : vector<8x16xf32>, vector<16x32xf32>, vector<8x32xf32> -> vector<8x32xf32>
      %c0_85 = arith.constant 0 : index
      %c0_86 = arith.constant 0 : index
      %235 = vector.load %arg15[%c0_85, %c0_86] : memref<64x128xbf16, #tpu.memory_space<vmem>>, vector<64x128xbf16>
      %236 = arith.truncf %233 : vector<8x32xf32> to vector<8x32xbf16>
      %237 = vector.extract_strided_slice %235 {offsets = [0, 0], sizes = [32, 128], strides = [1, 1]} : vector<64x128xbf16> to vector<32x128xbf16>
      %cst_87 = arith.constant dense<0.000000e+00> : vector<8x128xf32>
      %238 = tpu.matmul %236, %237, %cst_87 {dimension_numbers = #tpu.dot_dimension_numbers<[1], [0], [0], [1], [0, 0, 1, 1], [], []>} : vector<8x32xbf16>, vector<32x128xbf16>, vector<8x128xf32> -> vector<8x128xf32>
      %239 = arith.truncf %234 : vector<8x32xf32> to vector<8x32xbf16>
      %240 = vector.extract_strided_slice %235 {offsets = [32, 0], sizes = [32, 128], strides = [1, 1]} : vector<64x128xbf16> to vector<32x128xbf16>
      %cst_88 = arith.constant dense<0.000000e+00> : vector<8x128xf32>
      %241 = tpu.matmul %239, %240, %cst_88 {dimension_numbers = #tpu.dot_dimension_numbers<[1], [0], [0], [1], [0, 0, 1, 1], [], []>} : vector<8x32xbf16>, vector<32x128xbf16>, vector<8x128xf32> -> vector<8x128xf32>
      %242 = arith.addf %238, %241 : vector<8x128xf32>
      %243 = vector.broadcast %5 : vector<1x128xf32> to vector<8x128xf32>
      %244 = arith.addf %242, %243 : vector<8x128xf32>
      %cst_89 = arith.constant dense<0xFF800000> : vector<8xf32>
      %245 = vector.multi_reduction <maximumf>, %244, %cst_89 [1] : vector<8x128xf32> to vector<8xf32>
      %246 = vector.shape_cast %245 : vector<8xf32> to vector<8x1xf32>
      %247 = vector.broadcast %246 : vector<8x1xf32> to vector<8x128xf32>
      %248 = arith.subf %244, %247 : vector<8x128xf32>
      %249 = math.exp %248 : vector<8x128xf32>
      %cst_90 = arith.constant dense<0.000000e+00> : vector<8xf32>
      %250 = vector.multi_reduction <add>, %249, %cst_90 [1] : vector<8x128xf32> to vector<8xf32>
      %251 = vector.shape_cast %250 : vector<8xf32> to vector<8x1xf32>
      %252 = math.log %251 : vector<8x1xf32>
      %253 = vector.broadcast %252 : vector<8x1xf32> to vector<8x128xf32>
      %254 = arith.subf %248, %253 : vector<8x128xf32>
      %c0_91 = arith.constant 0 : index
      %c0_92 = arith.constant 0 : index
      %c0_93 = arith.constant 0 : index
      %c0_94 = arith.constant 0 : index
      %255 = vector.load %arg17[%c0_91, %c0_92, %c0_93, %c0_94] : memref<1x1x8x128xf32, #tpu.memory_space<vmem>>, vector<1x1x8x128xf32>
      %256 = vector.shape_cast %255 : vector<1x1x8x128xf32> to vector<8x128xf32>
      %257 = vector.shape_cast %254 : vector<8x128xf32> to vector<1x1x8x128xf32>
      tpu.vector_store %arg17[%c0_91, %c0_92, %c0_93, %c0_94], %257 {strides = array<i32>} : memref<1x1x8x128xf32, #tpu.memory_space<vmem>>, vector<1x1x8x128xf32>,
    } else {
    }
    return
  }
  func.func @transform_0(%arg0: i32, %arg1: i32) -> (i32, i32, i32) {
    %c0_i32 = arith.constant 0 : i32
    %c0_i32_0 = arith.constant 0 : i32
    %c0_i32_1 = arith.constant 0 : i32
    return %arg1, %c0_i32, %c0_i32_0 : i32, i32, i32
  }
  func.func @transform_1(%arg0: i32, %arg1: i32) -> (i32, i32, i32) {
    %c0_i32 = arith.constant 0 : i32
    %c0_i32_0 = arith.constant 0 : i32
    %c0_i32_1 = arith.constant 0 : i32
    return %arg1, %c0_i32, %c0_i32_0 : i32, i32, i32
  }
  func.func @transform_2(%arg0: i32, %arg1: i32) -> (i32, i32) {
    %c0_i32 = arith.constant 0 : i32
    %c0_i32_0 = arith.constant 0 : i32
    %c0_i32_1 = arith.constant 0 : i32
    return %c0_i32, %c0_i32_0 : i32, i32
  }
  func.func @transform_3(%arg0: i32, %arg1: i32) -> (i32, i32, i32) {
    %c0_i32 = arith.constant 0 : i32
    %c0_i32_0 = arith.constant 0 : i32
    %c0_i32_1 = arith.constant 0 : i32
    return %arg1, %c0_i32, %c0_i32_0 : i32, i32, i32
  }
  func.func @transform_4(%arg0: i32, %arg1: i32) -> (i32, i32) {
    %c0_i32 = arith.constant 0 : i32
    %c0_i32_0 = arith.constant 0 : i32
    %c0_i32_1 = arith.constant 0 : i32
    return %c0_i32, %c0_i32_0 : i32, i32
  }
  func.func @transform_5(%arg0: i32, %arg1: i32) -> (i32, i32) {
    %c0_i32 = arith.constant 0 : i32
    %c0_i32_0 = arith.constant 0 : i32
    %c0_i32_1 = arith.constant 0 : i32
    return %c0_i32, %c0_i32_0 : i32, i32
  }
  func.func @transform_6(%arg0: i32, %arg1: i32) -> (i32, i32) {
    %c0_i32 = arith.constant 0 : i32
    %c0_i32_0 = arith.constant 0 : i32
    %c0_i32_1 = arith.constant 0 : i32
    return %c0_i32, %c0_i32_0 : i32, i32
  }
  func.func @transform_7(%arg0: i32, %arg1: i32) -> (i32, i32, i32) {
    %c0_i32 = arith.constant 0 : i32
    %c0_i32_0 = arith.constant 0 : i32
    %c0_i32_1 = arith.constant 0 : i32
    return %arg0, %c0_i32, %c0_i32_0 : i32, i32, i32
  }
  func.func @transform_8(%arg0: i32, %arg1: i32) -> (i32, i32, i32) {
    %c0_i32 = arith.constant 0 : i32
    %c0_i32_0 = arith.constant 0 : i32
    %c0_i32_1 = arith.constant 0 : i32
    return %arg0, %c0_i32, %c0_i32_0 : i32, i32, i32
  }
  func.func @transform_9(%arg0: i32, %arg1: i32) -> (i32, i32, i32) {
    %c0_i32 = arith.constant 0 : i32
    %c0_i32_0 = arith.constant 0 : i32
    %c0_i32_1 = arith.constant 0 : i32
    return %arg0, %c0_i32, %c0_i32_0 : i32, i32, i32
  }
  func.func @transform_10(%arg0: i32, %arg1: i32) -> (i32, i32, i32) {
    %c0_i32 = arith.constant 0 : i32
    %c0_i32_0 = arith.constant 0 : i32
    %c0_i32_1 = arith.constant 0 : i32
    return %arg0, %c0_i32, %c0_i32_0 : i32, i32, i32
  }
  func.func @transform_11(%arg0: i32, %arg1: i32) -> (i32, i32, i32) {
    %c0_i32 = arith.constant 0 : i32
    %c0_i32_0 = arith.constant 0 : i32
    %c0_i32_1 = arith.constant 0 : i32
    return %arg0, %c0_i32, %c0_i32_0 : i32, i32, i32
  }
  func.func @transform_12(%arg0: i32, %arg1: i32) -> (i32, i32, i32) {
    %c0_i32 = arith.constant 0 : i32
    %c0_i32_0 = arith.constant 0 : i32
    %c0_i32_1 = arith.constant 0 : i32
    return %arg0, %c0_i32, %c0_i32_0 : i32, i32, i32
  }
  func.func @transform_13(%arg0: i32, %arg1: i32) -> (i32, i32) {
    %c0_i32 = arith.constant 0 : i32
    %c0_i32_0 = arith.constant 0 : i32
    %c0_i32_1 = arith.constant 0 : i32
    return %c0_i32, %c0_i32_0 : i32, i32
  }
  func.func @transform_14(%arg0: i32, %arg1: i32) -> (i32, i32, i32, i32) {
    %c0_i32 = arith.constant 0 : i32
    %c0_i32_0 = arith.constant 0 : i32
    %c0_i32_1 = arith.constant 0 : i32
    return %arg0, %arg1, %c0_i32, %c0_i32_0 : i32, i32, i32, i32
  }
  func.func @transform_15(%arg0: i32, %arg1: i32) -> (i32, i32, i32, i32) {
    %c0_i32 = arith.constant 0 : i32
    %c0_i32_0 = arith.constant 0 : i32
    %c0_i32_1 = arith.constant 0 : i32
    return %arg0, %arg1, %c0_i32, %c0_i32_0 : i32, i32, i32, i32
  }
}

</mosaic_0001>

<llo_original>
// kernel: metadata2_forward.1
$region0: #{metadata2_forward.1}
  #allocation0 [shape = 'u32[]', space=smem, size = 0x4, offset = 0x4, fixed_abs, tag = 'smem constant byte address 0x4 - core index']
  #allocation1 [shape = 'u32[72,128]{1,0:T(1,128)}', space=vmem, size = 0x9000, scoped, tag = 'internal scratch']
  %s0 = inlined_call_operand.vmem [shape: bf16[1,16,32], index: 0, kind: input, shape index: {}]
  %s1 = inlined_call_operand.vmem [shape: f32[1,1,16], index: 1, kind: input, shape index: {}]
  %s2 = inlined_call_operand.vmem [shape: f32[16,16], index: 2, kind: input, shape index: {}]
  %s3 = inlined_call_operand.vmem [shape: s32[1,8,2], index: 3, kind: input, shape index: {}]
  %s4 = inlined_call_operand.vmem [shape: bf16[32,32], index: 4, kind: input, shape index: {}]
  %s5 = inlined_call_operand.vmem [shape: bf16[32,32], index: 5, kind: input, shape index: {}]
  %s6 = inlined_call_operand.vmem [shape: f32[3,128], index: 6, kind: input, shape index: {}]
  %s7 = inlined_call_operand.vmem [shape: bf16[7,32,96], index: 7, kind: input, shape index: {}]
  %s8 = inlined_call_operand.vmem [shape: bf16[7,32,32], index: 8, kind: input, shape index: {}]
  %s9 = inlined_call_operand.vmem [shape: bf16[7,32,64], index: 9, kind: input, shape index: {}]
  %s10 = inlined_call_operand.vmem [shape: bf16[7,64,32], index: 10, kind: input, shape index: {}]
  %s11 = inlined_call_operand.hbm [shape: bf16[7,32,128], index: 11, kind: input, shape index: {}]
  %s12 = inlined_call_operand.vmem [shape: f32[7,9,128], index: 12, kind: input, shape index: {}]
  %s13 = inlined_call_operand.vmem [shape: bf16[64,128], index: 13, kind: input, shape index: {}]
  %s14 = inlined_call_operand.vmem [shape: f32[7,1,16,128], index: 14, kind: output, shape index: {0}]
  %s15 = inlined_call_operand.vmem [shape: f32[7,1,8,128], index: 15, kind: output, shape index: {1}]
  %16 = xla_tuple %s14, %s15
  %s17 = sld [smem:[#allocation0]]
  $region109: #{metadata2_forward.1} parent=0
    _
  %s19 = ssub.s32 1, %s17
  %s20 = scalar_select 0, %s19, %s17
  $region1: #{metadata2_forward.1} parent=0
    #allocation2 [shape = 'u8[16384]{0}', space=vmem, size = 0x4000, scoped, tag = 'input window, operand 11']
    #allocation3 [shape = 's32[2]{0}', space=sflag, size = 0x8, scoped, tag = 'scoped memory for metadata2_forward.1']
    %21 = vsyncpa [#allocation3], 0
    %s22 = scalar_lea.sflag [#allocation3], 1
    %23 = vsyncpa %s22, 0
    loop: start=0, step=1, limit=9
    $region2: #{metadata2_forward.1} parent=1 // loop_pre_header
      _
    $region3: #{metadata2_forward.1} parent=1 // loop_header
      %s25 = sphi 0, %s29
      %p26 = scmp.ge.s32.totalorder %s25, 9
      %s32 = sphi 0, %s44
      %s33 = sphi 0, %s40
      %s34 = sphi 0, %s32
      %s35 = sphi 0, %s33
      %s36 = sphi 0, %s34
      %s37 = sphi 0, %s35
      %s47 = sphi 0, %s49
      %s50 = sphi 0, %s47
      %s51 = sphi 0, %s50
      %s67 = sphi 0, %s51
      %s73 = sphi 0, %s75
      %s76 = sphi 0, %s73
      %s77 = sphi 0, %s76
      %s93 = sphi 0, %s77
      %s97 = sphi 0, %s97
      %s99 = sphi 0, %s97
      %s100 = sphi 0, %s99
      %s114 = sphi 0, %s100
      %s120 = sphi 0, %s122
      %s123 = sphi 0, %s120
      %s124 = sphi 0, %s123
      %s140 = sphi 0, %s124
      %s144 = sphi 0, %s144
      %s146 = sphi 0, %s144
      %s147 = sphi 0, %s146
      %s161 = sphi 0, %s147
      %s165 = sphi 0, %s165
      %s167 = sphi 0, %s165
      %s168 = sphi 0, %s167
      %s182 = sphi 0, %s168
      %s186 = sphi 0, %s186
      %s188 = sphi 0, %s186
      %s189 = sphi 0, %s188
      %s203 = sphi 0, %s189
      %s209 = sphi 0, %s211
      %s212 = sphi 0, %s209
      %s213 = sphi 0, %s212
      %s229 = sphi 0, %s213
      %s235 = sphi 0, %s237
      %s238 = sphi 0, %s235
      %s239 = sphi 0, %s238
      %s255 = sphi 0, %s239
      %s261 = sphi 0, %s263
      %s264 = sphi 0, %s261
      %s265 = sphi 0, %s264
      %s281 = sphi 0, %s265
      %s287 = sphi 0, %s289
      %s290 = sphi 0, %s287
      %s291 = sphi 0, %s290
      %s307 = sphi 0, %s291
      %s313 = sphi 0, %s315
      %s316 = sphi 0, %s313
      %s317 = sphi 0, %s316
      %s333 = sphi 0, %s317
      %s339 = sphi 0, %s341
      %s342 = sphi 0, %s339
      %s343 = sphi 0, %s342
      %s359 = sphi 0, %s343
      %s363 = sphi 0, %s363
      %s365 = sphi 0, %s363
      %s366 = sphi 0, %s365
      %s380 = sphi 0, %s366
      %s388 = sphi 0, %s390
      %s391 = sphi 0, %s388
      %s392 = sphi 0, %s391
      %s408 = sphi 0, %s392
      %s416 = sphi 0, %s418
      %s419 = sphi 0, %s416
      %s420 = sphi 0, %s419
      %s436 = sphi 0, %s420
    $region4: #{metadata2_forward.1} parent=1 // loop_header_branch
      %28 = sbr.rel (%p26) target = $region8
    $region5: #{metadata2_forward.1} parent=1 // loop_body
      %s30 = ssub.s32 %s25, 1
      %s31 = ssub.s32 %s25, 2
      %s38 = sadd.s32 1, %s33
      %p39 = scmp.ge.s32.totalorder %s38, 1
      %s40 = scalar_select %p39, 0, %s38
      %s41 = sadd.s32 1, %s32
      %s42 = scalar_select %p39, %s41, %s32
      %p43 = scmp.ge.s32.totalorder %s42, 7
      %s44 = scalar_select %p43, 0, %s42
      %s45 = ssub.s32 %s33, %s40
      %p46 = scmp.eq.s32.totalorder %s45, 0
      %s48 = sadd.s32 %s47, 1
      %s49 = scalar_select %p46, %s47, %s48
      %p52 = pneg %p46
      %p53 = scmp.eq.s32.totalorder %s25, 6
      %p54 = por %p52, %p53
      %p55 = scmp.ne.s32.totalorder %s47, %s50
      %p56 = scmp.eq.s32.totalorder %s25, 0
      %p57 = por %p55, %p56
      %p58 = scmp.ne.s32.totalorder %s47, %s50
      %p59 = scmp.eq.s32.totalorder %s30, 6
      %p60 = por %p58, %p59
      %p61 = scmp.ne.s32.totalorder %s50, %s51
      %p62 = scmp.eq.s32.totalorder %s30, 0
      %p63 = por %p61, %p62
      %p64 = scmp.ne.s32.totalorder %s50, %s51
      %p65 = scmp.eq.s32.totalorder %s31, 6
      %p66 = por %p64, %p65
      %p68 = scmp.ne.s32.totalorder %s51, %s67
      %p69 = scmp.eq.s32.totalorder %s31, 0
      %p70 = por %p68, %p69
      %s71 = ssub.s32 %s33, %s40
      %p72 = scmp.eq.s32.totalorder %s71, 0
      %s74 = sadd.s32 %s73, 1
      %s75 = scalar_select %p72, %s73, %s74
      %p78 = pneg %p72
      %p79 = scmp.eq.s32.totalorder %s25, 6
      %p80 = por %p78, %p79
      %p81 = scmp.ne.s32.totalorder %s73, %s76
      %p82 = scmp.eq.s32.totalorder %s25, 0
      %p83 = por %p81, %p82
      %p84 = scmp.ne.s32.totalorder %s73, %s76
      %p85 = scmp.eq.s32.totalorder %s30, 6
      %p86 = por %p84, %p85
      %p87 = scmp.ne.s32.totalorder %s76, %s77
      %p88 = scmp.eq.s32.totalorder %s30, 0
      %p89 = por %p87, %p88
      %p90 = scmp.ne.s32.totalorder %s76, %s77
      %p91 = scmp.eq.s32.totalorder %s31, 6
      %p92 = por %p90, %p91
      %p94 = scmp.ne.s32.totalorder %s77, %s93
      %p95 = scmp.eq.s32.totalorder %s31, 0
      %p96 = por %p94, %p95
      %s98 = sadd.s32 %s97, 1
      %p101 = scmp.eq.s32.totalorder %s25, 6
      %p102 = scmp.ne.s32.totalorder %s97, %s99
      %p103 = scmp.eq.s32.totalorder %s25, 0
      %p104 = por %p102, %p103
      %p105 = scmp.ne.s32.totalorder %s97, %s99
      %p106 = scmp.eq.s32.totalorder %s30, 6
      %p107 = por %p105, %p106
      %p108 = scmp.ne.s32.totalorder %s99, %s100
      %p109 = scmp.eq.s32.totalorder %s30, 0
      %p110 = por %p108, %p109
      %p111 = scmp.ne.s32.totalorder %s99, %s100
      %p112 = scmp.eq.s32.totalorder %s31, 6
      %p113 = por %p111, %p112
      %p115 = scmp.ne.s32.totalorder %s100, %s114
      %p116 = scmp.eq.s32.totalorder %s31, 0
      %p117 = por %p115, %p116
      %s118 = ssub.s32 %s33, %s40
      %p119 = scmp.eq.s32.totalorder %s118, 0
      %s121 = sadd.s32 %s120, 1
      %s122 = scalar_select %p119, %s120, %s121
      %p125 = pneg %p119
      %p126 = scmp.eq.s32.totalorder %s25, 6
      %p127 = por %p125, %p126
      %p128 = scmp.ne.s32.totalorder %s120, %s123
      %p129 = scmp.eq.s32.totalorder %s25, 0
      %p130 = por %p128, %p129
      %p131 = scmp.ne.s32.totalorder %s120, %s123
      %p132 = scmp.eq.s32.totalorder %s30, 6
      %p133 = por %p131, %p132
      %p134 = scmp.ne.s32.totalorder %s123, %s124
      %p135 = scmp.eq.s32.totalorder %s30, 0
      %p136 = por %p134, %p135
      %p137 = scmp.ne.s32.totalorder %s123, %s124
      %p138 = scmp.eq.s32.totalorder %s31, 6
      %p139 = por %p137, %p138
      %p141 = scmp.ne.s32.totalorder %s124, %s140
      %p142 = scmp.eq.s32.totalorder %s31, 0
      %p143 = por %p141, %p142
      %s145 = sadd.s32 %s144, 1
      %p148 = scmp.eq.s32.totalorder %s25, 6
      %p149 = scmp.ne.s32.totalorder %s144, %s146
      %p150 = scmp.eq.s32.totalorder %s25, 0
      %p151 = por %p149, %p150
      %p152 = scmp.ne.s32.totalorder %s144, %s146
      %p153 = scmp.eq.s32.totalorder %s30, 6
      %p154 = por %p152, %p153
      %p155 = scmp.ne.s32.totalorder %s146, %s147
      %p156 = scmp.eq.s32.totalorder %s30, 0
      %p157 = por %p155, %p156
      %p158 = scmp.ne.s32.totalorder %s146, %s147
      %p159 = scmp.eq.s32.totalorder %s31, 6
      %p160 = por %p158, %p159
      %p162 = scmp.ne.s32.totalorder %s147, %s161
      %p163 = scmp.eq.s32.totalorder %s31, 0
      %p164 = por %p162, %p163
      %s166 = sadd.s32 %s165, 1
      %p169 = scmp.eq.s32.totalorder %s25, 6
      %p170 = scmp.ne.s32.totalorder %s165, %s167
      %p171 = scmp.eq.s32.totalorder %s25, 0
      %p172 = por %p170, %p171
      %p173 = scmp.ne.s32.totalorder %s165, %s167
      %p174 = scmp.eq.s32.totalorder %s30, 6
      %p175 = por %p173, %p174
      %p176 = scmp.ne.s32.totalorder %s167, %s168
      %p177 = scmp.eq.s32.totalorder %s30, 0
      %p178 = por %p176, %p177
      %p179 = scmp.ne.s32.totalorder %s167, %s168
      %p180 = scmp.eq.s32.totalorder %s31, 6
      %p181 = por %p179, %p180
      %p183 = scmp.ne.s32.totalorder %s168, %s182
      %p184 = scmp.eq.s32.totalorder %s31, 0
      %p185 = por %p183, %p184
      %s187 = sadd.s32 %s186, 1
      %p190 = scmp.eq.s32.totalorder %s25, 6
      %p191 = scmp.ne.s32.totalorder %s186, %s188
      %p192 = scmp.eq.s32.totalorder %s25, 0
      %p193 = por %p191, %p192
      %p194 = scmp.ne.s32.totalorder %s186, %s188
      %p195 = scmp.eq.s32.totalorder %s30, 6
      %p196 = por %p194, %p195
      %p197 = scmp.ne.s32.totalorder %s188, %s189
      %p198 = scmp.eq.s32.totalorder %s30, 0
      %p199 = por %p197, %p198
      %p200 = scmp.ne.s32.totalorder %s188, %s189
      %p201 = scmp.eq.s32.totalorder %s31, 6
      %p202 = por %p200, %p201
      %p204 = scmp.ne.s32.totalorder %s189, %s203
      %p205 = scmp.eq.s32.totalorder %s31, 0
      %p206 = por %p204, %p205
      %s207 = ssub.s32 %s32, %s44
      %p208 = scmp.eq.s32.totalorder %s207, 0
      %s210 = sadd.s32 %s209, 1
      %s211 = scalar_select %p208, %s209, %s210
      %p214 = pneg %p208
      %p215 = scmp.eq.s32.totalorder %s25, 6
      %p216 = por %p214, %p215
      %p217 = scmp.ne.s32.totalorder %s209, %s212
      %p218 = scmp.eq.s32.totalorder %s25, 0
      %p219 = por %p217, %p218
      %p220 = scmp.ne.s32.totalorder %s209, %s212
      %p221 = scmp.eq.s32.totalorder %s30, 6
      %p222 = por %p220, %p221
      %p223 = scmp.ne.s32.totalorder %s212, %s213
      %p224 = scmp.eq.s32.totalorder %s30, 0
      %p225 = por %p223, %p224
      %p226 = scmp.ne.s32.totalorder %s212, %s213
      %p227 = scmp.eq.s32.totalorder %s31, 6
      %p228 = por %p226, %p227
      %p230 = scmp.ne.s32.totalorder %s213, %s229
      %p231 = scmp.eq.s32.totalorder %s31, 0
      %p232 = por %p230, %p231
      %s233 = ssub.s32 %s32, %s44
      %p234 = scmp.eq.s32.totalorder %s233, 0
      %s236 = sadd.s32 %s235, 1
      %s237 = scalar_select %p234, %s235, %s236
      %p240 = pneg %p234
      %p241 = scmp.eq.s32.totalorder %s25, 6
      %p242 = por %p240, %p241
      %p243 = scmp.ne.s32.totalorder %s235, %s238
      %p244 = scmp.eq.s32.totalorder %s25, 0
      %p245 = por %p243, %p244
      %p246 = scmp.ne.s32.totalorder %s235, %s238
      %p247 = scmp.eq.s32.totalorder %s30, 6
      %p248 = por %p246, %p247
      %p249 = scmp.ne.s32.totalorder %s238, %s239
      %p250 = scmp.eq.s32.totalorder %s30, 0
      %p251 = por %p249, %p250
      %p252 = scmp.ne.s32.totalorder %s238, %s239
      %p253 = scmp.eq.s32.totalorder %s31, 6
      %p254 = por %p252, %p253
      %p256 = scmp.ne.s32.totalorder %s239, %s255
      %p257 = scmp.eq.s32.totalorder %s31, 0
      %p258 = por %p256, %p257
      %s259 = ssub.s32 %s32, %s44
      %p260 = scmp.eq.s32.totalorder %s259, 0
      %s262 = sadd.s32 %s261, 1
      %s263 = scalar_select %p260, %s261, %s262
      %p266 = pneg %p260
      %p267 = scmp.eq.s32.totalorder %s25, 6
      %p268 = por %p266, %p267
      %p269 = scmp.ne.s32.totalorder %s261, %s264
      %p270 = scmp.eq.s32.totalorder %s25, 0
      %p271 = por %p269, %p270
      %p272 = scmp.ne.s32.totalorder %s261, %s264
      %p273 = scmp.eq.s32.totalorder %s30, 6
      %p274 = por %p272, %p273
      %p275 = scmp.ne.s32.totalorder %s264, %s265
      %p276 = scmp.eq.s32.totalorder %s30, 0
      %p277 = por %p275, %p276
      %p278 = scmp.ne.s32.totalorder %s264, %s265
      %p279 = scmp.eq.s32.totalorder %s31, 6
      %p280 = por %p278, %p279
      %p282 = scmp.ne.s32.totalorder %s265, %s281
      %p283 = scmp.eq.s32.totalorder %s31, 0
      %p284 = por %p282, %p283
      %s285 = ssub.s32 %s32, %s44
      %p286 = scmp.eq.s32.totalorder %s285, 0
      %s288 = sadd.s32 %s287, 1
      %s289 = scalar_select %p286, %s287, %s288
      %p292 = pneg %p286
      %p293 = scmp.eq.s32.totalorder %s25, 6
      %p294 = por %p292, %p293
      %p295 = scmp.ne.s32.totalorder %s287, %s290
      %p296 = scmp.eq.s32.totalorder %s25, 0
      %p297 = por %p295, %p296
      %p298 = scmp.ne.s32.totalorder %s287, %s290
      %p299 = scmp.eq.s32.totalorder %s30, 6
      %p300 = por %p298, %p299
      %p301 = scmp.ne.s32.totalorder %s290, %s291
      %p302 = scmp.eq.s32.totalorder %s30, 0
      %p303 = por %p301, %p302
      %p304 = scmp.ne.s32.totalorder %s290, %s291
      %p305 = scmp.eq.s32.totalorder %s31, 6
      %p306 = por %p304, %p305
      %p308 = scmp.ne.s32.totalorder %s291, %s307
      %p309 = scmp.eq.s32.totalorder %s31, 0
      %p310 = por %p308, %p309
      %s311 = ssub.s32 %s32, %s44
      %p312 = scmp.eq.s32.totalorder %s311, 0
      %s314 = sadd.s32 %s313, 1
      %s315 = scalar_select %p312, %s313, %s314
      %p318 = pneg %p312
      %p319 = scmp.eq.s32.totalorder %s25, 6
      %p320 = por %p318, %p319
      %p321 = scmp.ne.s32.totalorder %s313, %s316
      %p322 = scmp.eq.s32.totalorder %s25, 0
      %p323 = por %p321, %p322
      %p324 = scmp.ne.s32.totalorder %s313, %s316
      %p325 = scmp.eq.s32.totalorder %s30, 6
      %p326 = por %p324, %p325
      %p327 = scmp.ne.s32.totalorder %s316, %s317
      %p328 = scmp.eq.s32.totalorder %s30, 0
      %p329 = por %p327, %p328
      %p330 = scmp.ne.s32.totalorder %s316, %s317
      %p331 = scmp.eq.s32.totalorder %s31, 6
      %p332 = por %p330, %p331
      %p334 = scmp.ne.s32.totalorder %s317, %s333
      %p335 = scmp.eq.s32.totalorder %s31, 0
      %p336 = por %p334, %p335
      %s337 = ssub.s32 %s32, %s44
      %p338 = scmp.eq.s32.totalorder %s337, 0
      %s340 = sadd.s32 %s339, 1
      %s341 = scalar_select %p338, %s339, %s340
      %p344 = pneg %p338
      %p345 = scmp.eq.s32.totalorder %s25, 6
      %p346 = por %p344, %p345
      %p347 = scmp.ne.s32.totalorder %s339, %s342
      %p348 = scmp.eq.s32.totalorder %s25, 0
      %p349 = por %p347, %p348
      %p350 = scmp.ne.s32.totalorder %s339, %s342
      %p351 = scmp.eq.s32.totalorder %s30, 6
      %p352 = por %p350, %p351
      %p353 = scmp.ne.s32.totalorder %s342, %s343
      %p354 = scmp.eq.s32.totalorder %s30, 0
      %p355 = por %p353, %p354
      %p356 = scmp.ne.s32.totalorder %s342, %s343
      %p357 = scmp.eq.s32.totalorder %s31, 6
      %p358 = por %p356, %p357
      %p360 = scmp.ne.s32.totalorder %s343, %s359
      %p361 = scmp.eq.s32.totalorder %s31, 0
      %p362 = por %p360, %p361
      %s364 = sadd.s32 %s363, 1
      %p367 = scmp.eq.s32.totalorder %s25, 6
      %p368 = scmp.ne.s32.totalorder %s363, %s365
      %p369 = scmp.eq.s32.totalorder %s25, 0
      %p370 = por %p368, %p369
      %p371 = scmp.ne.s32.totalorder %s363, %s365
      %p372 = scmp.eq.s32.totalorder %s30, 6
      %p373 = por %p371, %p372
      %p374 = scmp.ne.s32.totalorder %s365, %s366
      %p375 = scmp.eq.s32.totalorder %s30, 0
      %p376 = por %p374, %p375
      %p377 = scmp.ne.s32.totalorder %s365, %s366
      %p378 = scmp.eq.s32.totalorder %s31, 6
      %p379 = por %p377, %p378
      %p381 = scmp.ne.s32.totalorder %s366, %s380
      %p382 = scmp.eq.s32.totalorder %s31, 0
      %p383 = por %p381, %p382
      %s384 = ssub.s32 %s32, %s44
      %s385 = ssub.s32 %s33, %s40
      %s386 = sor.u32 %s384, %s385
      %p387 = scmp.eq.s32.totalorder %s386, 0
      %s389 = sadd.s32 %s388, 1
      %s390 = scalar_select %p387, %s388, %s389
      %p393 = pneg %p387
      %p394 = scmp.eq.s32.totalorder %s25, 6
      %p395 = por %p393, %p394
      %p396 = scmp.ne.s32.totalorder %s388, %s391
      %p397 = scmp.eq.s32.totalorder %s25, 0
      %p398 = por %p396, %p397
      %p399 = scmp.ne.s32.totalorder %s388, %s391
      %p400 = scmp.eq.s32.totalorder %s30, 6
      %p401 = por %p399, %p400
      %p402 = scmp.ne.s32.totalorder %s391, %s392
      %p403 = scmp.eq.s32.totalorder %s30, 0
      %p404 = por %p402, %p403
      %p405 = scmp.ne.s32.totalorder %s391, %s392
      %p406 = scmp.eq.s32.totalorder %s31, 6
      %p407 = por %p405, %p406
      %p409 = scmp.ne.s32.totalorder %s392, %s408
      %p410 = scmp.eq.s32.totalorder %s31, 0
      %p411 = por %p409, %p410
      %s412 = ssub.s32 %s32, %s44
      %s413 = ssub.s32 %s33, %s40
      %s414 = sor.u32 %s412, %s413
      %p415 = scmp.eq.s32.totalorder %s414, 0
      %s417 = sadd.s32 %s416, 1
      %s418 = scalar_select %p415, %s416, %s417
      %p421 = pneg %p415
      %p422 = scmp.eq.s32.totalorder %s25, 6
      %p423 = por %p421, %p422
      %p424 = scmp.ne.s32.totalorder %s416, %s419
      %p425 = scmp.eq.s32.totalorder %s25, 0
      %p426 = por %p424, %p425
      %p427 = scmp.ne.s32.totalorder %s416, %s419
      %p428 = scmp.eq.s32.totalorder %s30, 6
      %p429 = por %p427, %p428
      %p430 = scmp.ne.s32.totalorder %s419, %s420
      %p431 = scmp.eq.s32.totalorder %s30, 0
      %p432 = por %p430, %p431
      %p433 = scmp.ne.s32.totalorder %s419, %s420
      %p434 = scmp.eq.s32.totalorder %s31, 6
      %p435 = por %p433, %p434
      %p437 = scmp.ne.s32.totalorder %s420, %s436
      %p438 = scmp.eq.s32.totalorder %s31, 0
      %p439 = por %p437, %p438
      %p440 = scmp.le.s32.totalorder 1, %s25
      %p441 = scmp.lt.s32.totalorder %s25, 8
      %p442 = pnand %p440, %p441
      %p443 = pneg %p442
      // Predicated region
      $region9: #{metadata2_forward.1} parent=5 // pred_check
        _
      $region10: #{metadata2_forward.1} parent=5 // pred_check_branch
        %445 = sbr.rel (%p442) target = $region12
      $region11: #{metadata2_forward.1} parent=5 // pred_region
        %s446 = ssub.s32 %s25, 1
        // Predicated region
        $region13: #{metadata2_forward.1} parent=11 // pred_check
          %p447 = pneg %p63
        $region14: #{metadata2_forward.1} parent=11 // pred_check_branch
          %449 = sbr.rel (%p447) target = $region16
        $region15: #{metadata2_forward.1} parent=11 // pred_region
          %p450 = scmp.lt.s32.totalorder %s35, 0
          %s451 = scalar_select %p450, %s35, 0
          %s452 = smul.addr %s451, 2
          %s453 = smul.addr %s452, 4
          %s454 = scalar_lea.vmem %s0, %s453
        $region16: #{metadata2_forward.1} parent=11 // pred_fallthru
          _
        // Predicated region
        $region17: #{metadata2_forward.1} parent=11 // pred_check
          %p455 = pneg %p89
        $region18: #{metadata2_forward.1} parent=11 // pred_check_branch
          %457 = sbr.rel (%p455) target = $region20
        $region19: #{metadata2_forward.1} parent=11 // pred_region
          %p458 = scmp.lt.s32.totalorder %s35, 0
          %s459 = scalar_select %p458, %s35, 0
          %s460 = scalar_lea.vmem %s1, %s459
        $region20: #{metadata2_forward.1} parent=11 // pred_fallthru
          _
        // Predicated region
        $region21: #{metadata2_forward.1} parent=11 // pred_check
          %p461 = pneg %p110
        $region22: #{metadata2_forward.1} parent=11 // pred_check_branch
          %463 = sbr.rel (%p461) target = $region24
        $region23: #{metadata2_forward.1} parent=11 // pred_region
          _
        $region24: #{metadata2_forward.1} parent=11 // pred_fallthru
          _
        // Predicated region
        $region25: #{metadata2_forward.1} parent=11 // pred_check
          %p464 = pneg %p136
        $region26: #{metadata2_forward.1} parent=11 // pred_check_branch
          %466 = sbr.rel (%p464) target = $region28
        $region27: #{metadata2_forward.1} parent=11 // pred_region
          %p467 = scmp.lt.s32.totalorder %s35, 0
          %s468 = scalar_select %p467, %s35, 0
          %s469 = smul.addr %s468, 8
          %s470 = scalar_lea.vmem %s3, %s469
        $region28: #{metadata2_forward.1} parent=11 // pred_fallthru
          _
        // Predicated region
        $region29: #{metadata2_forward.1} parent=11 // pred_check
          %p471 = pneg %p157
        $region30: #{metadata2_forward.1} parent=11 // pred_check_branch
          %473 = sbr.rel (%p471) target = $region32
        $region31: #{metadata2_forward.1} parent=11 // pred_region
          _
        $region32: #{metadata2_forward.1} parent=11 // pred_fallthru
          _
        // Predicated region
        $region33: #{metadata2_forward.1} parent=11 // pred_check
          %p474 = pneg %p178
        $region34: #{metadata2_forward.1} parent=11 // pred_check_branch
          %476 = sbr.rel (%p474) target = $region36
        $region35: #{metadata2_forward.1} parent=11 // pred_region
          _
        $region36: #{metadata2_forward.1} parent=11 // pred_fallthru
          _
        // Predicated region
        $region37: #{metadata2_forward.1} parent=11 // pred_check
          %p477 = pneg %p199
        $region38: #{metadata2_forward.1} parent=11 // pred_check_branch
          %479 = sbr.rel (%p477) target = $region40
        $region39: #{metadata2_forward.1} parent=11 // pred_region
          _
        $region40: #{metadata2_forward.1} parent=11 // pred_fallthru
          _
        // Predicated region
        $region41: #{metadata2_forward.1} parent=11 // pred_check
          %p480 = pneg %p376
        $region42: #{metadata2_forward.1} parent=11 // pred_check_branch
          %482 = sbr.rel (%p480) target = $region44
        $region43: #{metadata2_forward.1} parent=11 // pred_region
          _
        $region44: #{metadata2_forward.1} parent=11 // pred_fallthru
          _
      $region12: #{metadata2_forward.1} parent=5 // pred_fallthru
        _
      %p483 = scmp.lt.s32.totalorder %s25, 7
      // Predicated region
      $region45: #{metadata2_forward.1} parent=5 // pred_check
        %p484 = pneg %p483
      $region46: #{metadata2_forward.1} parent=5 // pred_check_branch
        %486 = sbr.rel (%p484) target = $region48
      $region47: #{metadata2_forward.1} parent=5 // pred_region
        // Predicated region
        $region49: #{metadata2_forward.1} parent=47 // pred_check
          %p487 = pneg %p219
        $region50: #{metadata2_forward.1} parent=47 // pred_check_branch
          %489 = sbr.rel (%p487) target = $region52
        $region51: #{metadata2_forward.1} parent=47 // pred_region
          %p490 = scmp.lt.s32.totalorder %s32, 6
          %s491 = scalar_select %p490, %s32, 6
          %s492 = smul.addr %s491, 4
          %s493 = smul.addr %s492, 4
          %s494 = scalar_lea.vmem %s7, %s493
        $region52: #{metadata2_forward.1} parent=47 // pred_fallthru
          _
        // Predicated region
        $region53: #{metadata2_forward.1} parent=47 // pred_check
          %p495 = pneg %p245
        $region54: #{metadata2_forward.1} parent=47 // pred_check_branch
          %497 = sbr.rel (%p495) target = $region56
        $region55: #{metadata2_forward.1} parent=47 // pred_region
          %p498 = scmp.lt.s32.totalorder %s32, 6
          %s499 = scalar_select %p498, %s32, 6
          %s500 = smul.addr %s499, 4
          %s501 = smul.addr %s500, 4
          %s502 = scalar_lea.vmem %s8, %s501
        $region56: #{metadata2_forward.1} parent=47 // pred_fallthru
          _
        // Predicated region
        $region57: #{metadata2_forward.1} parent=47 // pred_check
          %p503 = pneg %p271
        $region58: #{metadata2_forward.1} parent=47 // pred_check_branch
          %505 = sbr.rel (%p503) target = $region60
        $region59: #{metadata2_forward.1} parent=47 // pred_region
          %p506 = scmp.lt.s32.totalorder %s32, 6
          %s507 = scalar_select %p506, %s32, 6
          %s508 = smul.addr %s507, 4
          %s509 = smul.addr %s508, 4
          %s510 = scalar_lea.vmem %s9, %s509
        $region60: #{metadata2_forward.1} parent=47 // pred_fallthru
          _
        // Predicated region
        $region61: #{metadata2_forward.1} parent=47 // pred_check
          %p511 = pneg %p297
        $region62: #{metadata2_forward.1} parent=47 // pred_check_branch
          %513 = sbr.rel (%p511) target = $region64
        $region63: #{metadata2_forward.1} parent=47 // pred_region
          %p514 = scmp.lt.s32.totalorder %s32, 6
          %s515 = scalar_select %p514, %s32, 6
          %s516 = smul.addr %s515, 8
          %s517 = smul.addr %s516, 4
          %s518 = scalar_lea.vmem %s10, %s517
        $region64: #{metadata2_forward.1} parent=47 // pred_fallthru
          _
        // Predicated region
        $region65: #{metadata2_forward.1} parent=47 // pred_check
          %p519 = pneg %p323
        $region66: #{metadata2_forward.1} parent=47 // pred_check_branch
          %521 = sbr.rel (%p519) target = $region68
        $region67: #{metadata2_forward.1} parent=47 // pred_region
          %s522 = sand.u32 %s313, 1
          %s523 = scalar_lea.sflag [#allocation3], %s522
          %s524 = sand.u32 %s313, 1
          %s525 = smul.addr %s524, 16
          %s526 = scalar_lea.vmem [#allocation2], %s525
          %528 = vsyncadd %s523, 0
          %s529 = smul.addr %s32, 4
          %s530 = smul.addr %s529, 4
          %s531 = scalar_lea.hbm %s11, %s530
          %s532 = sshll.u32 %s531, 4
          %s533 = int_to_ptr.hbm [resolvable:$true] %s532
          %s534 = sshll.u32 %s526, 4
          %s535 = int_to_ptr.vmem [resolvable:$true] %s534
          %540 = dma.hbm_to_vmem [thread:$0]  %s533, 256, %s535, %s523, 64, 64, 4
        $region68: #{metadata2_forward.1} parent=47 // pred_fallthru
          _
        // Predicated region
        $region69: #{metadata2_forward.1} parent=47 // pred_check
          %p541 = pneg %p349
        $region70: #{metadata2_forward.1} parent=47 // pred_check_branch
          %543 = sbr.rel (%p541) target = $region72
        $region71: #{metadata2_forward.1} parent=47 // pred_region
          %p544 = scmp.lt.s32.totalorder %s32, 6
          %s545 = scalar_select %p544, %s32, 6
          %s546 = smul.addr %s545, 2
          %s547 = smul.addr %s546, 8
          %s548 = scalar_lea.vmem %s12, %s547
        $region72: #{metadata2_forward.1} parent=47 // pred_fallthru
          _
      $region48: #{metadata2_forward.1} parent=5 // pred_fallthru
        _
      %p549 = scmp.le.s32.totalorder 1, %s25
      %p550 = scmp.lt.s32.totalorder %s25, 8
      %p551 = pnand %p549, %p550
      %p552 = pneg %p551
      // Predicated region
      $region73: #{metadata2_forward.1} parent=5 // pred_check
        _
      $region74: #{metadata2_forward.1} parent=5 // pred_check_branch
        %554 = sbr.rel (%p551) target = $region76
      $region75: #{metadata2_forward.1} parent=5 // pred_region
        %s555 = ssub.s32 %s25, 1
        %s556 = sand.u32 %s316, 1
        %s557 = scalar_lea.sflag [#allocation3], %s556
        %s558 = sand.u32 %s316, 1
        %s559 = smul.addr %s558, 16
        %s560 = scalar_lea.vmem [#allocation2], %s559
        // Predicated region
        $region77: #{metadata2_forward.1} parent=75 // pred_check
          %p561 = pneg %p329
        $region78: #{metadata2_forward.1} parent=75 // pred_check_branch
          %563 = sbr.rel (%p561) target = $region80
        $region79: #{metadata2_forward.1} parent=75 // pred_region
          %565 = dma.done %s557, 256
        $region80: #{metadata2_forward.1} parent=75 // pred_fallthru
          _
        %p566 = scmp.lt.s32.totalorder %s35, 0
        %s567 = scalar_select %p566, %s35, 0
        %s568 = smul.addr %s567, 2
        %s569 = smul.addr %s568, 4
        %s570 = scalar_lea.vmem %s0, %s569
        %p571 = pneg %p63
        %p572 = pneg %p60
        %p573 = scmp.lt.s32.totalorder %s35, 0
        %s574 = scalar_select %p573, %s35, 0
        %s575 = scalar_lea.vmem %s1, %s574
        %p576 = pneg %p89
        %p577 = pneg %p86
        %p578 = pneg %p110
        %p579 = pneg %p107
        %p580 = scmp.lt.s32.totalorder %s35, 0
        %s581 = scalar_select %p580, %s35, 0
        %s582 = smul.addr %s581, 8
        %s583 = scalar_lea.vmem %s3, %s582
        %p584 = pneg %p136
        %p585 = pneg %p133
        %p586 = pneg %p157
        %p587 = pneg %p154
        %p588 = pneg %p178
        %p589 = pneg %p175
        %p590 = pneg %p199
        %p591 = pneg %p196
        %p592 = scmp.lt.s32.totalorder %s34, 6
        %s593 = scalar_select %p592, %s34, 6
        %s594 = smul.addr %s593, 4
        %s595 = smul.addr %s594, 4
        %s596 = scalar_lea.vmem %s7, %s595
        %p597 = pneg %p225
        %p598 = pneg %p222
        %p599 = scmp.lt.s32.totalorder %s34, 6
        %s600 = scalar_select %p599, %s34, 6
        %s601 = smul.addr %s600, 4
        %s602 = smul.addr %s601, 4
        %s603 = scalar_lea.vmem %s8, %s602
        %p604 = pneg %p251
        %p605 = pneg %p248
        %p606 = scmp.lt.s32.totalorder %s34, 6
        %s607 = scalar_select %p606, %s34, 6
        %s608 = smul.addr %s607, 4
        %s609 = smul.addr %s608, 4
        %s610 = scalar_lea.vmem %s9, %s609
        %p611 = pneg %p277
        %p612 = pneg %p274
        %p613 = scmp.lt.s32.totalorder %s34, 6
        %s614 = scalar_select %p613, %s34, 6
        %s615 = smul.addr %s614, 8
        %s616 = smul.addr %s615, 4
        %s617 = scalar_lea.vmem %s10, %s616
        %p618 = pneg %p303
        %p619 = pneg %p300
        %s620 = sand.u32 %s316, 1
        %s621 = scalar_lea.sflag [#allocation3], %s620
        %s622 = sand.u32 %s316, 1
        %s623 = smul.addr %s622, 16
        %s624 = scalar_lea.vmem [#allocation2], %s623
        %p625 = pneg %p329
        %p626 = pneg %p326
        %p627 = scmp.lt.s32.totalorder %s34, 6
        %s628 = scalar_select %p627, %s34, 6
        %s629 = smul.addr %s628, 2
        %s630 = smul.addr %s629, 8
        %s631 = scalar_lea.vmem %s12, %s630
        %p632 = pneg %p355
        %p633 = pneg %p352
        %p634 = pneg %p376
        %p635 = pneg %p373
        %p636 = pneg %p404
        %p637 = pneg %p401
        %p638 = scmp.lt.s32.totalorder %s34, 6
        %s639 = scalar_select %p638, %s34, 6
        %p640 = scmp.lt.s32.totalorder %s35, 0
        %s641 = scalar_select %p640, %s35, 0
        %s642 = smul.addr %s641, 2
        %s643 = smul.addr %s639, 2
        %s644 = sadd.s32 %s642, %s643
        %s645 = smul.addr %s644, 8
        %s646 = scalar_lea.vmem %s14, %s645
        %p647 = pneg %p432
        %p648 = pneg %p429
        %p649 = scmp.lt.s32.totalorder %s34, 6
        %s650 = scalar_select %p649, %s34, 6
        %p651 = scmp.lt.s32.totalorder %s35, 0
        %s652 = scalar_select %p651, %s35, 0
        %s653 = sadd.s32 %s652, %s650
        %s654 = smul.addr %s653, 8
        %s655 = scalar_lea.vmem %s15, %s654
        %p656 = scmp.lt.s32.totalorder %s35, 0
        %s657 = scalar_select %p656, %s35, 0
        %s658 = smul.addr %s657, 2
        %s659 = smul.addr %s658, 4
        %s660 = scalar_lea.vmem %s0, %s659
        %p661 = scmp.lt.s32.totalorder %s35, 0
        %s662 = scalar_select %p661, %s35, 0
        %s663 = scalar_lea.vmem %s1, %s662
        %p664 = scmp.lt.s32.totalorder %s35, 0
        %s665 = scalar_select %p664, %s35, 0
        %s666 = smul.addr %s665, 8
        %s667 = scalar_lea.vmem %s3, %s666
        %p668 = scmp.lt.s32.totalorder %s34, 6
        %s669 = scalar_select %p668, %s34, 6
        %s670 = smul.addr %s669, 4
        %s671 = smul.addr %s670, 4
        %s672 = scalar_lea.vmem %s7, %s671
        %p673 = scmp.lt.s32.totalorder %s34, 6
        %s674 = scalar_select %p673, %s34, 6
        %s675 = smul.addr %s674, 4
        %s676 = smul.addr %s675, 4
        %s677 = scalar_lea.vmem %s8, %s676
        %p678 = scmp.lt.s32.totalorder %s34, 6
        %s679 = scalar_select %p678, %s34, 6
        %s680 = smul.addr %s679, 4
        %s681 = smul.addr %s680, 4
        %s682 = scalar_lea.vmem %s9, %s681
        %p683 = scmp.lt.s32.totalorder %s34, 6
        %s684 = scalar_select %p683, %s34, 6
        %s685 = smul.addr %s684, 8
        %s686 = smul.addr %s685, 4
        %s687 = scalar_lea.vmem %s10, %s686
        %p688 = scmp.lt.s32.totalorder %s34, 6
        %s689 = scalar_select %p688, %s34, 6
        %s690 = smul.addr %s689, 2
        %s691 = smul.addr %s690, 8
        %s692 = scalar_lea.vmem %s12, %s691
        %p693 = scmp.lt.s32.totalorder %s34, 6
        %s694 = scalar_select %p693, %s34, 6
        %p695 = scmp.lt.s32.totalorder %s35, 0
        %s696 = scalar_select %p695, %s35, 0
        %s697 = smul.addr %s696, 2
        %s698 = smul.addr %s694, 2
        %s699 = sadd.s32 %s697, %s698
        %s700 = smul.addr %s699, 8
        %s701 = scalar_lea.vmem %s14, %s700
        %p702 = scmp.lt.s32.totalorder %s34, 6
        %s703 = scalar_select %p702, %s34, 6
        %p704 = scmp.lt.s32.totalorder %s35, 0
        %s705 = scalar_select %p704, %s35, 0
        %s706 = sadd.s32 %s705, %s703
        %s707 = smul.addr %s706, 8
        %s708 = scalar_lea.vmem %s15, %s707
        %v710 = vld [vmem:[%s6] sm:$0x7]
        %v711 = vld [vmem:[%s692] sm:$0xff]
        %v712 = vld [vmem:[%s692 + $0x8] sm:$0x1]
        %v713 = vld [vmem:[%s660] sm:$0xf]
        %v714 = vld [vmem:[%s660 + $0x4] sm:$0xf]
        %v715 = vld [vmem:[%s4] sm:$0xf]
        %v716 = vld [vmem:[%s4 + $0x4] sm:$0xf]
        %v717 = vld [vmem:[%s4 + $0x8] sm:$0xf]
        %v718 = vld [vmem:[%s4 + $0xc] sm:$0xf]
        %v719 = vperm.slane %v710, 0
        %v722 = vunpack.c.l.b16 %v713
        %v723 = vunpack.c.l.b16 %v714
        %v724 = vpack.c.b16 %v723, %v722
        %v729 = vunpack.c.l.b16 %v715
        %v730 = vunpack.c.l.b16 %v716
        %v731 = vunpack.c.l.b16 %v717
        %v732 = vunpack.c.l.b16 %v718
        %v733 = vpack.c.b16 %v730, %v729
        %v734 = vpack.c.b16 %v732, %v731
        %vm737 = vcmask 261120
        %v739 = vsel %vm737, %v724, 0
        %741 = vmatpush.bf16.msra.mxu0 0
        %742 = vmatpush.bf16.msra.mxu0 0
        %743 = vmatpush.bf16.msra.mxu0 0
        %744 = vmatpush.bf16.msra.mxu0 0
        %745 = vmatpush.bf16.msra.mxu0 0
        %746 = vmatpush.bf16.msra.mxu0 0
        %747 = vmatpush.bf16.msra.mxu0 %v734
        %748 = vmatpush.bf16.msra.mxu0 %v733
        %749 = vmatmul.bf16.gmra.mxu0 %v739
        %v750 = vpop.f32.mrf.mxu0
        %v751 = vadd.f32 %v719, %v750
        %v752 = vpop.f32.mrf.mxu0
        %v753 = vadd.f32 %v719, %v752
        %754 = vdwg.mxu0
        %v755 = vpack.c.bf16 %v753, %v751
        %v756 = vld [vmem:[%s5] sm:$0xf]
        %v757 = vld [vmem:[%s5 + $0x4] sm:$0xf]
        %v758 = vld [vmem:[%s5 + $0x8] sm:$0xf]
        %v759 = vld [vmem:[%s5 + $0xc] sm:$0xf]
        %v760 = vperm.slane %v710, 1
        %v765 = vunpack.c.l.b16 %v756
        %v766 = vunpack.c.l.b16 %v757
        %v767 = vunpack.c.l.b16 %v758
        %v768 = vunpack.c.l.b16 %v759
        %v769 = vpack.c.b16 %v766, %v765
        %v770 = vpack.c.b16 %v768, %v767
        %v774 = vsel %vm737, %v755, 0
        %776 = vmatpush.bf16.msra.mxu0 0
        %777 = vmatpush.bf16.msra.mxu0 0
        %778 = vmatpush.bf16.msra.mxu0 0
        %779 = vmatpush.bf16.msra.mxu0 0
        %780 = vmatpush.bf16.msra.mxu0 0
        %781 = vmatpush.bf16.msra.mxu0 0
        %782 = vmatpush.bf16.msra.mxu0 %v770
        %783 = vmatpush.bf16.msra.mxu0 %v769
        %784 = vmatmul.bf16.gmra.mxu0 %v774
        %v785 = vpop.f32.mrf.mxu0
        %v786 = vadd.f32 %v760, %v785
        %v787 = vpop.f32.mrf.mxu0
        %v788 = vadd.f32 %v760, %v787
        %789 = vdwg.mxu0
        %v790 = vld [vmem:[%s2] sm:$0xff]
        %v791 = vld [vmem:[%s2 + $0x8] sm:$0xff]
        %v792 = vld [vmem:[%s663] sm:$0x1]
        %v794 = vperm.slane %v792, 0
        %v796 = vadd.f32 %v790, %v794
        %v797 = vadd.f32 %v791, %v794
        %v798 = vpack.c.bf16 %v788, %v786
        %v799 = vld [vmem:[%s672] sm:$0xf]
        %v800 = vld [vmem:[%s672 + $0x4] sm:$0xf]
        %v801 = vld [vmem:[%s672 + $0x8] sm:$0xf]
        %v802 = vld [vmem:[%s672 + $0xc] sm:$0xf]
        %v803 = vperm.slane %v711, 0
        %v808 = vunpack.c.l.b16 %v799
        %v809 = vunpack.c.l.b16 %v800
        %v810 = vunpack.c.l.b16 %v801
        %v811 = vunpack.c.l.b16 %v802
        %v812 = vpack.c.b16 %v809, %v808
        %v813 = vpack.c.b16 %v811, %v810
        %v817 = vsel %vm737, %v798, 0
        %819 = vmatpush.bf16.msra.mxu0 0
        %820 = vmatpush.bf16.msra.mxu0 0
        %821 = vmatpush.bf16.msra.mxu0 0
        %822 = vmatpush.bf16.msra.mxu0 0
        %823 = vmatpush.bf16.msra.mxu0 0
        %824 = vmatpush.bf16.msra.mxu0 0
        %825 = vmatpush.bf16.msra.mxu0 %v813
        %826 = vmatpush.bf16.msra.mxu0 %v812
        %827 = vmatmul.bf16.gmra.mxu0 %v817
        %v828 = vpop.f32.mrf.mxu0
        %v829 = vadd.f32 %v803, %v828
        %v830 = vpop.f32.mrf.mxu0
        %v831 = vadd.f32 %v803, %v830
        %832 = vdwg.mxu0
        %v833 = vpack.c.bf16 %v829, %v829
        %v834 = vpack.c.bf16 %v831, %v831
        %v835 = vld [vmem:[%s677] sm:$0xf]
        %v836 = vld [vmem:[%s677 + $0x4] sm:$0xf]
        %v837 = vld [vmem:[%s677 + $0x8] sm:$0xf]
        %v838 = vld [vmem:[%s677 + $0xc] sm:$0xf]
        %v841 = vunpack.c.l.b16 %v833
        %v842 = vunpack.c.l.b16 %v834
        %v843 = vpack.c.b16 %v842, %v841
        %844 = vrot.lane.b32.xlu0 %v843, 96
        %v845 = vpop.permute.xlu0 %844
        %vm846 = vcmask 64512
        %v848 = vsel %vm846, %v843, 0
        %v851 = vsel %vm846, %v845, 0
        %853 = vmatpush.bf16.xpose.msra.mxu0 0
        %854 = vmatpush.bf16.xpose.msra.mxu0 0
        %855 = vmatpush.bf16.xpose.msra.mxu0 0
        %856 = vmatpush.bf16.xpose.msra.mxu0 0
        %857 = vmatpush.bf16.xpose.msra.mxu0 0
        %858 = vmatpush.bf16.xpose.msra.mxu0 0
        %859 = vmatpush.bf16.xpose.msra.mxu0 0
        %860 = vmatpush.bf16.xpose.msra.mxu0 %v851
        %861 = vmatmul.bf16.gmra.mxu0 %v848
        %v862 = vpop.f32.mrf.mxu0
        %v863 = vadd.f32 0.0, %v862
        %v864 = vpop.f32.mrf.mxu0
        %v865 = vadd.f32 0.0, %v864
        %866 = vdwg.mxu0
        %v867 = vmul.f32 %v863, 0.35355338
        %v868 = vmul.f32 %v865, 0.35355338
        %v869 = vadd.f32 %v867, %v796
        %v870 = vadd.f32 %v868, %v797
        %vm871 = vcmask 130048
        %v872 = vsel %vm871, %v869, -inf
        %873 = vmax.xlane.f32.xlu0 %v872
        %v874 = vpop.xlane.xlu0 %873
        %v875 = vsel %vm871, %v870, -inf
        %876 = vmax.xlane.f32.xlu0 %v875
        %v877 = vpop.xlane.xlu0 %876
        %v878 = vsub.f32 %v869, %v874
        %v879 = vsub.f32 %v870, %v877
        %v880 = vmul.f32 %v878, 1.442695
        %v881 = vpow.pop %v880
        %v882 = vmul.f32 %v879, 1.442695
        %v883 = vpow.pop %v882
        %v884 = vsel %vm871, %v881, 0.0
        %885 = vadd.xlane.f32.xlu0 %v884
        %v886 = vpop.xlane.xlu0 %885
        %v887 = vsel %vm871, %v883, 0.0
        %888 = vadd.xlane.f32.xlu0 %v887
        %v889 = vpop.xlane.xlu0 %888
        %v890 = vrcp.pop %v886
        %v891 = vrcp.pop %v889
        %v892 = vmul.f32 %v881, %v890
        %v893 = vmul.f32 %v883, %v891
        %v894 = vpack.c.bf16 %v893, %v892
        %895 = vrot.lane.b32.xlu0 %v843, 64
        %v896 = vpop.permute.xlu0 %895
        %v899 = vsel %vm871, %v894, 0
        %901 = vmatpush.bf16.msra.mxu0 0
        %902 = vmatpush.bf16.msra.mxu0 0
        %903 = vmatpush.bf16.msra.mxu0 0
        %904 = vmatpush.bf16.msra.mxu0 0
        %905 = vmatpush.bf16.msra.mxu0 0
        %906 = vmatpush.bf16.msra.mxu0 0
        %907 = vmatpush.bf16.msra.mxu0 0
        %908 = vmatpush.bf16.msra.mxu0 %v896
        %909 = vmatmul.bf16.gmra.mxu0 %v899
        %v910 = vpop.f32.mrf.mxu0
        %v911 = vadd.f32 0.0, %v910
        %v912 = vpop.f32.mrf.mxu0
        %v913 = vadd.f32 0.0, %v912
        %914 = vdwg.mxu0
        %v915 = vpack.c.bf16 %v913, %v911
        %916 = vrot.lane.b32.xlu0 %v843, 120
        %v917 = vpop.permute.xlu0 %916
        %918 = vrot.lane.b32.xlu0 %v843, 88
        %v919 = vpop.permute.xlu0 %918
        %v921 = vsel %vm846, %v917, 0
        %v924 = vsel %vm846, %v919, 0
        %926 = vmatpush.bf16.xpose.msra.mxu0 0
        %927 = vmatpush.bf16.xpose.msra.mxu0 0
        %928 = vmatpush.bf16.xpose.msra.mxu0 0
        %929 = vmatpush.bf16.xpose.msra.mxu0 0
        %930 = vmatpush.bf16.xpose.msra.mxu0 0
        %931 = vmatpush.bf16.xpose.msra.mxu0 0
        %932 = vmatpush.bf16.xpose.msra.mxu0 0
        %933 = vmatpush.bf16.xpose.msra.mxu0 %v924
        %934 = vmatmul.bf16.gmra.mxu0 %v921
        %v935 = vpop.f32.mrf.mxu0
        %v936 = vadd.f32 0.0, %v935
        %v937 = vpop.f32.mrf.mxu0
        %v938 = vadd.f32 0.0, %v937
        %939 = vdwg.mxu0
        %v940 = vmul.f32 %v936, 0.35355338
        %v941 = vmul.f32 %v938, 0.35355338
        %v942 = vadd.f32 %v940, %v796
        %v943 = vadd.f32 %v941, %v797
        %v944 = vsel %vm871, %v942, -inf
        %945 = vmax.xlane.f32.xlu0 %v944
        %v946 = vpop.xlane.xlu0 %945
        %v947 = vsel %vm871, %v943, -inf
        %948 = vmax.xlane.f32.xlu0 %v947
        %v949 = vpop.xlane.xlu0 %948
        %v950 = vsub.f32 %v942, %v946
        %v951 = vsub.f32 %v943, %v949
        %v952 = vmul.f32 %v950, 1.442695
        %v953 = vpow.pop %v952
        %v954 = vmul.f32 %v951, 1.442695
        %v955 = vpow.pop %v954
        %v956 = vsel %vm871, %v953, 0.0
        %957 = vadd.xlane.f32.xlu0 %v956
        %v958 = vpop.xlane.xlu0 %957
        %v959 = vsel %vm871, %v955, 0.0
        %960 = vadd.xlane.f32.xlu0 %v959
        %v961 = vpop.xlane.xlu0 %960
        %v962 = vrcp.pop %v958
        %v963 = vrcp.pop %v961
        %v964 = vmul.f32 %v953, %v962
        %v965 = vmul.f32 %v955, %v963
        %v966 = vpack.c.bf16 %v965, %v964
        %967 = vrot.lane.b32.xlu0 %v843, 56
        %v968 = vpop.permute.xlu0 %967
        %v971 = vsel %vm871, %v966, 0
        %973 = vmatpush.bf16.msra.mxu0 0
        %974 = vmatpush.bf16.msra.mxu0 0
        %975 = vmatpush.bf16.msra.mxu0 0
        %976 = vmatpush.bf16.msra.mxu0 0
        %977 = vmatpush.bf16.msra.mxu0 0
        %978 = vmatpush.bf16.msra.mxu0 0
        %979 = vmatpush.bf16.msra.mxu0 0
        %980 = vmatpush.bf16.msra.mxu0 %v968
        %981 = vmatmul.bf16.gmra.mxu0 %v971
        %v982 = vpop.f32.mrf.mxu0
        %v983 = vadd.f32 0.0, %v982
        %v984 = vpop.f32.mrf.mxu0
        %v985 = vadd.f32 0.0, %v984
        %986 = vdwg.mxu0
        %v987 = vpack.c.bf16 %v985, %v983
        %v989 = vsel %vm846, %v987, 0
        %vm991 = vcmask 1043456
        %v993 = vsel %vm991, %v836, 0
        %995 = vmatpush.bf16.msra.mxu0 0
        %996 = vmatpush.bf16.msra.mxu0 0
        %997 = vmatpush.bf16.msra.mxu0 0
        %998 = vmatpush.bf16.msra.mxu0 0
        %999 = vmatpush.bf16.msra.mxu0 0
        %1000 = vmatpush.bf16.msra.mxu0 0
        %1001 = vmatpush.bf16.msra.mxu0 0
        %1002 = vmatpush.bf16.msra.mxu0 %v993
        %1003 = vmatmul.bf16.gmra.mxu0 %v989
        %v1004 = vpop.f32.mrf.mxu0
        %v1005 = vadd.f32 0.0, %v1004
        %v1006 = vpop.f32.mrf.mxu0
        %v1007 = vadd.f32 0.0, %v1006
        %1008 = vdwg.mxu0
        %v1010 = vsel %vm846, %v915, 0
        %v1013 = vsel %vm991, %v835, 0
        %1015 = vmatpush.bf16.msra.mxu0 0
        %1016 = vmatpush.bf16.msra.mxu0 0
        %1017 = vmatpush.bf16.msra.mxu0 0
        %1018 = vmatpush.bf16.msra.mxu0 0
        %1019 = vmatpush.bf16.msra.mxu0 0
        %1020 = vmatpush.bf16.msra.mxu0 0
        %1021 = vmatpush.bf16.msra.mxu0 0
        %1022 = vmatpush.bf16.msra.mxu0 %v1013
        %1023 = vmatmul.bf16.gmra.mxu0 %v1010
        %v1024 = vpop.f32.mrf.mxu0
        %v1025 = vadd.f32 %v1005, %v1024
        %v1026 = vpop.f32.mrf.mxu0
        %v1027 = vadd.f32 %v1007, %v1026
        %1028 = vdwg.mxu0
        %1029 = vrot.lane.b32.xlu0 %v843, 112
        %v1030 = vpop.permute.xlu0 %1029
        %1031 = vrot.lane.b32.xlu0 %v843, 80
        %v1032 = vpop.permute.xlu0 %1031
        %v1034 = vsel %vm846, %v1030, 0
        %v1037 = vsel %vm846, %v1032, 0
        %1039 = vmatpush.bf16.xpose.msra.mxu0 0
        %1040 = vmatpush.bf16.xpose.msra.mxu0 0
        %1041 = vmatpush.bf16.xpose.msra.mxu0 0
        %1042 = vmatpush.bf16.xpose.msra.mxu0 0
        %1043 = vmatpush.bf16.xpose.msra.mxu0 0
        %1044 = vmatpush.bf16.xpose.msra.mxu0 0
        %1045 = vmatpush.bf16.xpose.msra.mxu0 0
        %1046 = vmatpush.bf16.xpose.msra.mxu0 %v1037
        %1047 = vmatmul.bf16.gmra.mxu0 %v1034
        %v1048 = vpop.f32.mrf.mxu0
        %v1049 = vadd.f32 0.0, %v1048
        %v1050 = vpop.f32.mrf.mxu0
        %v1051 = vadd.f32 0.0, %v1050
        %1052 = vdwg.mxu0
        %v1053 = vmul.f32 %v1049, 0.35355338
        %v1054 = vmul.f32 %v1051, 0.35355338
        %v1055 = vadd.f32 %v1053, %v796
        %v1056 = vadd.f32 %v1054, %v797
        %v1057 = vsel %vm871, %v1055, -inf
        %1058 = vmax.xlane.f32.xlu0 %v1057
        %v1059 = vpop.xlane.xlu0 %1058
        %v1060 = vsel %vm871, %v1056, -inf
        %1061 = vmax.xlane.f32.xlu0 %v1060
        %v1062 = vpop.xlane.xlu0 %1061
        %v1063 = vsub.f32 %v1055, %v1059
        %v1064 = vsub.f32 %v1056, %v1062
        %v1065 = vmul.f32 %v1063, 1.442695
        %v1066 = vpow.pop %v1065
        %v1067 = vmul.f32 %v1064, 1.442695
        %v1068 = vpow.pop %v1067
        %v1069 = vsel %vm871, %v1066, 0.0
        %1070 = vadd.xlane.f32.xlu0 %v1069
        %v1071 = vpop.xlane.xlu0 %1070
        %v1072 = vsel %vm871, %v1068, 0.0
        %1073 = vadd.xlane.f32.xlu0 %v1072
        %v1074 = vpop.xlane.xlu0 %1073
        %v1075 = vrcp.pop %v1071
        %v1076 = vrcp.pop %v1074
        %v1077 = vmul.f32 %v1066, %v1075
        %v1078 = vmul.f32 %v1068, %v1076
        %v1079 = vpack.c.bf16 %v1078, %v1077
        %1080 = vrot.lane.b32.xlu0 %v843, 48
        %v1081 = vpop.permute.xlu0 %1080
        %v1084 = vsel %vm871, %v1079, 0
        %1086 = vmatpush.bf16.msra.mxu0 0
        %1087 = vmatpush.bf16.msra.mxu0 0
        %1088 = vmatpush.bf16.msra.mxu0 0
        %1089 = vmatpush.bf16.msra.mxu0 0
        %1090 = vmatpush.bf16.msra.mxu0 0
        %1091 = vmatpush.bf16.msra.mxu0 0
        %1092 = vmatpush.bf16.msra.mxu0 0
        %1093 = vmatpush.bf16.msra.mxu0 %v1081
        %1094 = vmatmul.bf16.gmra.mxu0 %v1084
        %v1095 = vpop.f32.mrf.mxu0
        %v1096 = vadd.f32 0.0, %v1095
        %v1097 = vpop.f32.mrf.mxu0
        %v1098 = vadd.f32 0.0, %v1097
        %1099 = vdwg.mxu0
        %v1100 = vpack.c.bf16 %v1098, %v1096
        %v1102 = vsel %vm846, %v1100, 0
        %v1105 = vsel %vm991, %v837, 0
        %1107 = vmatpush.bf16.msra.mxu0 0
        %1108 = vmatpush.bf16.msra.mxu0 0
        %1109 = vmatpush.bf16.msra.mxu0 0
        %1110 = vmatpush.bf16.msra.mxu0 0
        %1111 = vmatpush.bf16.msra.mxu0 0
        %1112 = vmatpush.bf16.msra.mxu0 0
        %1113 = vmatpush.bf16.msra.mxu0 0
        %1114 = vmatpush.bf16.msra.mxu0 %v1105
        %1115 = vmatmul.bf16.gmra.mxu0 %v1102
        %v1116 = vpop.f32.mrf.mxu0
        %v1117 = vadd.f32 0.0, %v1116
        %v1118 = vpop.f32.mrf.mxu0
        %v1119 = vadd.f32 0.0, %v1118
        %1120 = vdwg.mxu0
        %v1121 = vadd.f32 %v1025, %v1117
        %v1122 = vadd.f32 %v1027, %v1119
        %1123 = vrot.lane.b32.xlu0 %v843, 104
        %v1124 = vpop.permute.xlu0 %1123
        %1125 = vrot.lane.b32.xlu0 %v843, 72
        %v1126 = vpop.permute.xlu0 %1125
        %v1128 = vsel %vm846, %v1124, 0
        %v1131 = vsel %vm846, %v1126, 0
        %1133 = vmatpush.bf16.xpose.msra.mxu0 0
        %1134 = vmatpush.bf16.xpose.msra.mxu0 0
        %1135 = vmatpush.bf16.xpose.msra.mxu0 0
        %1136 = vmatpush.bf16.xpose.msra.mxu0 0
        %1137 = vmatpush.bf16.xpose.msra.mxu0 0
        %1138 = vmatpush.bf16.xpose.msra.mxu0 0
        %1139 = vmatpush.bf16.xpose.msra.mxu0 0
        %1140 = vmatpush.bf16.xpose.msra.mxu0 %v1131
        %1141 = vmatmul.bf16.gmra.mxu0 %v1128
        %v1142 = vpop.f32.mrf.mxu0
        %v1143 = vadd.f32 0.0, %v1142
        %v1144 = vpop.f32.mrf.mxu0
        %v1145 = vadd.f32 0.0, %v1144
        %1146 = vdwg.mxu0
        %v1147 = vmul.f32 %v1143, 0.35355338
        %v1148 = vmul.f32 %v1145, 0.35355338
        %v1149 = vadd.f32 %v1147, %v796
        %v1150 = vadd.f32 %v1148, %v797
        %v1151 = vsel %vm871, %v1149, -inf
        %1152 = vmax.xlane.f32.xlu0 %v1151
        %v1153 = vpop.xlane.xlu0 %1152
        %v1154 = vsel %vm871, %v1150, -inf
        %1155 = vmax.xlane.f32.xlu0 %v1154
        %v1156 = vpop.xlane.xlu0 %1155
        %v1157 = vsub.f32 %v1149, %v1153
        %v1158 = vsub.f32 %v1150, %v1156
        %v1159 = vmul.f32 %v1157, 1.442695
        %v1160 = vpow.pop %v1159
        %v1161 = vmul.f32 %v1158, 1.442695
        %v1162 = vpow.pop %v1161
        %v1163 = vsel %vm871, %v1160, 0.0
        %1164 = vadd.xlane.f32.xlu0 %v1163
        %v1165 = vpop.xlane.xlu0 %1164
        %v1166 = vsel %vm871, %v1162, 0.0
        %1167 = vadd.xlane.f32.xlu0 %v1166
        %v1168 = vpop.xlane.xlu0 %1167
        %v1169 = vrcp.pop %v1165
        %v1170 = vrcp.pop %v1168
        %v1171 = vmul.f32 %v1160, %v1169
        %v1172 = vmul.f32 %v1162, %v1170
        %v1173 = vpack.c.bf16 %v1172, %v1171
        %1174 = vrot.lane.b32.xlu0 %v843, 40
        %v1175 = vpop.permute.xlu0 %1174
        %v1178 = vsel %vm871, %v1173, 0
        %1180 = vmatpush.bf16.msra.mxu0 0
        %1181 = vmatpush.bf16.msra.mxu0 0
        %1182 = vmatpush.bf16.msra.mxu0 0
        %1183 = vmatpush.bf16.msra.mxu0 0
        %1184 = vmatpush.bf16.msra.mxu0 0
        %1185 = vmatpush.bf16.msra.mxu0 0
        %1186 = vmatpush.bf16.msra.mxu0 0
        %1187 = vmatpush.bf16.msra.mxu0 %v1175
        %1188 = vmatmul.bf16.gmra.mxu0 %v1178
        %v1189 = vpop.f32.mrf.mxu0
        %v1190 = vadd.f32 0.0, %v1189
        %v1191 = vpop.f32.mrf.mxu0
        %v1192 = vadd.f32 0.0, %v1191
        %1193 = vdwg.mxu0
        %v1194 = vpack.c.bf16 %v1192, %v1190
        %v1196 = vsel %vm846, %v1194, 0
        %v1199 = vsel %vm991, %v838, 0
        %1201 = vmatpush.bf16.msra.mxu0 0
        %1202 = vmatpush.bf16.msra.mxu0 0
        %1203 = vmatpush.bf16.msra.mxu0 0
        %1204 = vmatpush.bf16.msra.mxu0 0
        %1205 = vmatpush.bf16.msra.mxu0 0
        %1206 = vmatpush.bf16.msra.mxu0 0
        %1207 = vmatpush.bf16.msra.mxu0 0
        %1208 = vmatpush.bf16.msra.mxu0 %v1199
        %1209 = vmatmul.bf16.gmra.mxu0 %v1196
        %v1210 = vpop.f32.mrf.mxu0
        %v1211 = vadd.f32 0.0, %v1210
        %v1212 = vpop.f32.mrf.mxu0
        %v1213 = vadd.f32 0.0, %v1212
        %1214 = vdwg.mxu0
        %v1215 = vadd.f32 %v1121, %v1211
        %v1216 = vadd.f32 %v1122, %v1213
        %v1217 = vperm.slane %v711, 1
        %v1218 = vadd.f32 %v1215, %v1217
        %v1219 = vadd.f32 %v1216, %v1217
        %v1220 = vadd.f32 %v786, %v1218
        %v1221 = vadd.f32 %v788, %v1219
        %v1222 = vsel %vm737, %v1220, 0.0
        %1223 = vadd.xlane.f32.xlu0 %v1222
        %v1224 = vpop.xlane.xlu0 %1223
        %v1225 = vsel %vm737, %v1221, 0.0
        %1226 = vadd.xlane.f32.xlu0 %v1225
        %v1227 = vpop.xlane.xlu0 %1226
        %v1228 = vrcp.pop 32.0
        %v1229 = vmul.f32 32.0, %v1228
        %v1230 = vsub.f32 1.0, %v1229
        %v1231 = vmul.f32 %v1228, %v1230
        %v1232 = vadd.f32 %v1228, %v1231
        %vm1233 = vweird.f32 %v1228
        %v1234 = vsel %vm1233, %v1228, %v1232
        %v1235 = vmul.f32 %v1224, %v1234
        %v1236 = vmul.f32 %v1227, %v1234
        %v1237 = vmul.f32 %v1220, %v1220
        %v1238 = vmul.f32 %v1221, %v1221
        %v1239 = vsel %vm737, %v1237, 0.0
        %1240 = vadd.xlane.f32.xlu0 %v1239
        %v1241 = vpop.xlane.xlu0 %1240
        %v1242 = vsel %vm737, %v1238, 0.0
        %1243 = vadd.xlane.f32.xlu0 %v1242
        %v1244 = vpop.xlane.xlu0 %1243
        %v1245 = vmul.f32 %v1241, %v1234
        %v1246 = vmul.f32 %v1244, %v1234
        %v1247 = vmul.f32 %v1235, %v1235
        %v1248 = vmul.f32 %v1236, %v1236
        %v1249 = vsub.f32 %v1245, %v1247
        %v1250 = vsub.f32 %v1246, %v1248
        %v1251 = vsub.f32 %v1220, %v1235
        %v1252 = vsub.f32 %v1221, %v1236
        %v1253 = vadd.f32 %v1249, 1e-05
        %v1254 = vadd.f32 %v1250, 1e-05
        %v1255 = vrsqrt.pop %v1253
        %v1256 = vmul.f32 %v1255, %v1253
        %v1257 = vmul.f32 %v1256, %v1255
        %v1258 = vmul.f32 0.5, %v1257
        %v1259 = vsub.f32 1.5, %v1258
        %v1260 = vmul.f32 %v1255, %v1259
        %vm1261 = vweird.f32 %v1253
        %vm1262 = vweird.f32 %v1255
        %vm1263 = vmor %vm1261, %vm1262
        %v1264 = vsel %vm1263, %v1255, %v1260
        %v1265 = vrsqrt.pop %v1254
        %v1266 = vmul.f32 %v1265, %v1254
        %v1267 = vmul.f32 %v1266, %v1265
        %v1268 = vmul.f32 0.5, %v1267
        %v1269 = vsub.f32 1.5, %v1268
        %v1270 = vmul.f32 %v1265, %v1269
        %vm1271 = vweird.f32 %v1254
        %vm1272 = vweird.f32 %v1265
        %vm1273 = vmor %vm1271, %vm1272
        %v1274 = vsel %vm1273, %v1265, %v1270
        %v1275 = vmul.f32 %v1251, %v1264
        %v1276 = vmul.f32 %v1252, %v1274
        %v1277 = vperm.slane %v711, 2
        %v1278 = vmul.f32 %v1275, %v1277
        %v1279 = vmul.f32 %v1276, %v1277
        %v1280 = vperm.slane %v711, 3
        %v1281 = vadd.f32 %v1278, %v1280
        %v1282 = vadd.f32 %v1279, %v1280
        %v1283 = vpack.c.bf16 %v1282, %v1281
        %v1284 = vld [vmem:[%s682] sm:$0xf]
        %v1285 = vld [vmem:[%s682 + $0x4] sm:$0xf]
        %v1286 = vld [vmem:[%s682 + $0x8] sm:$0xf]
        %v1287 = vld [vmem:[%s682 + $0xc] sm:$0xf]
        %v1288 = vperm.slane %v711, 4
        %v1293 = vunpack.c.l.b16 %v1284
        %v1294 = vunpack.c.l.b16 %v1285
        %v1295 = vunpack.c.l.b16 %v1286
        %v1296 = vunpack.c.l.b16 %v1287
        %v1297 = vpack.c.b16 %v1294, %v1293
        %v1298 = vpack.c.b16 %v1296, %v1295
        %v1302 = vsel %vm737, %v1283, 0
        %1304 = vmatpush.bf16.msra.mxu0 0
        %1305 = vmatpush.bf16.msra.mxu0 0
        %1306 = vmatpush.bf16.msra.mxu0 0
        %1307 = vmatpush.bf16.msra.mxu0 0
        %1308 = vmatpush.bf16.msra.mxu0 0
        %1309 = vmatpush.bf16.msra.mxu0 0
        %1310 = vmatpush.bf16.msra.mxu0 %v1298
        %1311 = vmatpush.bf16.msra.mxu0 %v1297
        %1312 = vmatmul.bf16.gmra.mxu0 %v1302
        %v1313 = vpop.f32.mrf.mxu0
        %v1314 = vadd.f32 %v1288, %v1313
        %v1315 = vpop.f32.mrf.mxu0
        %v1316 = vadd.f32 %v1288, %v1315
        %1317 = vdwg.mxu0
        %v1318 = vmax.f32 %v1314, 0.0
        %v1319 = vmax.f32 %v1316, 0.0
        %v1320 = vpack.c.bf16 %v1319, %v1318
        %v1321 = vld [vmem:[%s687] sm:$0xf]
        %v1322 = vld [vmem:[%s687 + $0x4] sm:$0xf]
        %v1323 = vld [vmem:[%s687 + $0x8] sm:$0xf]
        %v1324 = vld [vmem:[%s687 + $0xc] sm:$0xf]
        %v1325 = vld [vmem:[%s687 + $0x10] sm:$0xf]
        %v1326 = vld [vmem:[%s687 + $0x14] sm:$0xf]
        %v1327 = vld [vmem:[%s687 + $0x18] sm:$0xf]
        %v1328 = vld [vmem:[%s687 + $0x1c] sm:$0xf]
        %v1329 = vperm.slane %v711, 5
        %v1338 = vunpack.c.l.b16 %v1321
        %v1339 = vunpack.c.l.b16 %v1322
        %v1340 = vunpack.c.l.b16 %v1323
        %v1341 = vunpack.c.l.b16 %v1324
        %v1342 = vunpack.c.l.b16 %v1325
        %v1343 = vunpack.c.l.b16 %v1326
        %v1344 = vunpack.c.l.b16 %v1327
        %v1345 = vunpack.c.l.b16 %v1328
        %v1346 = vpack.c.b16 %v1339, %v1338
        %v1347 = vpack.c.b16 %v1341, %v1340
        %v1348 = vpack.c.b16 %v1343, %v1342
        %v1349 = vpack.c.b16 %v1345, %v1344
        %vm1354 = vcmask 523264
        %v1356 = vsel %vm1354, %v1320, 0
        %1358 = vmatpush.bf16.msra.mxu0 0
        %1359 = vmatpush.bf16.msra.mxu0 0
        %1360 = vmatpush.bf16.msra.mxu0 0
        %1361 = vmatpush.bf16.msra.mxu0 0
        %1362 = vmatpush.bf16.msra.mxu0 %v1349
        %1363 = vmatpush.bf16.msra.mxu0 %v1348
        %1364 = vmatpush.bf16.msra.mxu0 %v1347
        %1365 = vmatpush.bf16.msra.mxu0 %v1346
        %1366 = vmatmul.bf16.gmra.mxu0 %v1356
        %v1367 = vpop.f32.mrf.mxu0
        %v1368 = vadd.f32 %v1329, %v1367
        %v1369 = vpop.f32.mrf.mxu0
        %v1370 = vadd.f32 %v1329, %v1369
        %1371 = vdwg.mxu0
        %v1372 = vadd.f32 %v1281, %v1368
        %v1373 = vadd.f32 %v1282, %v1370
        %v1374 = vsel %vm737, %v1372, 0.0
        %1375 = vadd.xlane.f32.xlu0 %v1374
        %v1376 = vpop.xlane.xlu0 %1375
        %v1377 = vsel %vm737, %v1373, 0.0
        %1378 = vadd.xlane.f32.xlu0 %v1377
        %v1379 = vpop.xlane.xlu0 %1378
        %v1380 = vmul.f32 %v1376, %v1234
        %v1381 = vmul.f32 %v1379, %v1234
        %v1382 = vmul.f32 %v1372, %v1372
        %v1383 = vmul.f32 %v1373, %v1373
        %v1384 = vsel %vm737, %v1382, 0.0
        %1385 = vadd.xlane.f32.xlu0 %v1384
        %v1386 = vpop.xlane.xlu0 %1385
        %v1387 = vsel %vm737, %v1383, 0.0
        %1388 = vadd.xlane.f32.xlu0 %v1387
        %v1389 = vpop.xlane.xlu0 %1388
        %v1390 = vmul.f32 %v1386, %v1234
        %v1391 = vmul.f32 %v1389, %v1234
        %v1392 = vmul.f32 %v1380, %v1380
        %v1393 = vmul.f32 %v1381, %v1381
        %v1394 = vsub.f32 %v1390, %v1392
        %v1395 = vsub.f32 %v1391, %v1393
        %v1396 = vsub.f32 %v1372, %v1380
        %v1397 = vsub.f32 %v1373, %v1381
        %v1398 = vadd.f32 %v1394, 1e-05
        %v1399 = vadd.f32 %v1395, 1e-05
        %v1400 = vrsqrt.pop %v1398
        %v1401 = vmul.f32 %v1400, %v1398
        %v1402 = vmul.f32 %v1401, %v1400
        %v1403 = vmul.f32 0.5, %v1402
        %v1404 = vsub.f32 1.5, %v1403
        %v1405 = vmul.f32 %v1400, %v1404
        %vm1406 = vweird.f32 %v1398
        %vm1407 = vweird.f32 %v1400
        %vm1408 = vmor %vm1406, %vm1407
        %v1409 = vsel %vm1408, %v1400, %v1405
        %v1410 = vrsqrt.pop %v1399
        %v1411 = vmul.f32 %v1410, %v1399
        %v1412 = vmul.f32 %v1411, %v1410
        %v1413 = vmul.f32 0.5, %v1412
        %v1414 = vsub.f32 1.5, %v1413
        %v1415 = vmul.f32 %v1410, %v1414
        %vm1416 = vweird.f32 %v1399
        %vm1417 = vweird.f32 %v1410
        %vm1418 = vmor %vm1416, %vm1417
        %v1419 = vsel %vm1418, %v1410, %v1415
        %v1420 = vmul.f32 %v1396, %v1409
        %v1421 = vmul.f32 %v1397, %v1419
        %v1422 = vperm.slane %v711, 6
        %v1423 = vmul.f32 %v1420, %v1422
        %v1424 = vmul.f32 %v1421, %v1422
        %v1425 = vperm.slane %v711, 7
        %v1426 = vadd.f32 %v1423, %v1425
        %v1427 = vadd.f32 %v1424, %v1425
        %v1428 = vpack.c.bf16 %v1427, %v1426
        %v1429 = vld [vmem:[%s560] sm:$0xf]
        %v1430 = vld [vmem:[%s560 + $0x4] sm:$0xf]
        %v1431 = vld [vmem:[%s560 + $0x8] sm:$0xf]
        %v1432 = vld [vmem:[%s560 + $0xc] sm:$0xf]
        %v1433 = vperm.slane %v712, 0
        %v1438 = vunpack.c.l.b16 %v1429
        %v1439 = vunpack.c.l.b16 %v1430
        %v1440 = vunpack.c.l.b16 %v1431
        %v1441 = vunpack.c.l.b16 %v1432
        %v1442 = vpack.c.b16 %v1439, %v1438
        %v1443 = vpack.c.b16 %v1441, %v1440
        %v1447 = vsel %vm737, %v1428, 0
        %1449 = vmatpush.bf16.msra.mxu0 0
        %1450 = vmatpush.bf16.msra.mxu0 0
        %1451 = vmatpush.bf16.msra.mxu0 0
        %1452 = vmatpush.bf16.msra.mxu0 0
        %1453 = vmatpush.bf16.msra.mxu0 0
        %1454 = vmatpush.bf16.msra.mxu0 0
        %1455 = vmatpush.bf16.msra.mxu0 %v1443
        %1456 = vmatpush.bf16.msra.mxu0 %v1442
        %1457 = vmatmul.bf16.gmra.mxu0 %v1447
        %v1458 = vpop.f32.mrf.mxu0
        %v1459 = vadd.f32 %v1433, %v1458
        %v1460 = vpop.f32.mrf.mxu0
        %v1461 = vadd.f32 %v1433, %v1460
        %1462 = vdwg.mxu0
        %1463 = vmax.xlane.f32.xlu0 %v1459
        %v1464 = vpop.xlane.xlu0 %1463
        %1465 = vmax.xlane.f32.xlu0 %v1461
        %v1466 = vpop.xlane.xlu0 %1465
        %v1467 = vsub.f32 %v1459, %v1464
        %v1468 = vsub.f32 %v1461, %v1466
        %v1469 = vmul.f32 %v1467, 1.442695
        %v1470 = vpow.pop %v1469
        %v1471 = vmul.f32 %v1468, 1.442695
        %v1472 = vpow.pop %v1471
        %1473 = vadd.xlane.f32.xlu0 %v1470
        %v1474 = vpop.xlane.xlu0 %1473
        %1475 = vadd.xlane.f32.xlu0 %v1472
        %v1476 = vpop.xlane.xlu0 %1475
        %v1477 = vlog2.pop %v1474
        %v1478 = vmul.f32 %v1477, 0.6931472
        %v1479 = vlog2.pop %v1476
        %v1480 = vmul.f32 %v1479, 0.6931472
        %v1481 = vsub.f32 %v1467, %v1478
        %v1482 = vsub.f32 %v1468, %v1480
        %1483 = vst [vmem:[%s701] sm:$0xff] %v1481
        %1484 = vst [vmem:[%s701 + $0x8] sm:$0xff] %v1482
        %p1485 = scmp.ne.s32.totalorder %s34, 5
        // Predicated region
        $region81: #{metadata2_forward.1} parent=75 // pred_check
          %p1486 = pneg %p1485
        $region82: #{metadata2_forward.1} parent=75 // pred_check_branch
          %1488 = sbr.rel (%p1486) target = $region84
        $region83: #{metadata2_forward.1} parent=75 // pred_region
          %1489 = vst [vmem:[%s708] sm:$0xff] 0.0
        $region84: #{metadata2_forward.1} parent=75 // pred_fallthru
          _
        %p1490 = scmp.eq.s32.totalorder %s34, 5
        // Predicated region
        $region85: #{metadata2_forward.1} parent=75 // pred_check
          %p1491 = pneg %p1490
        $region86: #{metadata2_forward.1} parent=75 // pred_check_branch
          %1493 = sbr.rel (%p1491) target = $region88
        $region87: #{metadata2_forward.1} parent=75 // pred_region
          %v1494 = vld [vmem:[%s667] sm:$0xff]
          %v1495 = vlaneseq
          %v1496 = vand.u32 %v1495, 127
          %1497 = vset.pattern.permute.xlu0 0
          %1498 = vperm.xlu0 %1497, %v1494
          %v1499 = vpop.permute.xlu0 %1498
          %vm1500 = vcmp.eq.s32.totalorder %v1496, %v1499
          %v1501 = vsel %vm1500, 1, 0
          %v1502 = vcvt.s32.f32 %v1501
          %1503 = vset.pattern.permute.xlu0 1
          %1504 = vperm.xlu0 %1503, %v1494
          %v1505 = vpop.permute.xlu0 %1504
          %vm1506 = vcmp.eq.s32.totalorder %v1496, %v1505
          %v1507 = vsel %vm1506, 1, 0
          %v1508 = vcvt.s32.f32 %v1507
          %v1510 = vsel %vm871, %v1502, 0
          %1512 = vmatpush.msra.mxu0 0.0
          %1513 = vmatpush.msra.mxu0 0.0
          %1514 = vmatpush.msra.mxu0 0.0
          %1515 = vmatpush.msra.mxu0 0.0
          %1516 = vmatpush.msra.mxu0 0.0
          %1517 = vmatpush.msra.mxu0 0.0
          %1518 = vmatpush.msra.mxu0 0.0
          %1519 = vmatpush.msra.mxu0 0.0
          %1520 = vmatpush.msra.mxu0 0.0
          %1521 = vmatpush.msra.mxu0 0.0
          %1522 = vmatpush.msra.mxu0 0.0
          %1523 = vmatpush.msra.mxu0 0.0
          %1524 = vmatpush.msra.mxu0 0.0
          %1525 = vmatpush.msra.mxu0 0.0
          %1526 = vmatpush.msra.mxu0 %v1427
          %1527 = vmatpush.msra.mxu0 %v1426
          %1528 = vmatmul.f32.gmra.mxu0 %v1510
          %v1529 = vpop.f32.mrf.mxu0
          %v1530 = vadd.f32 0.0, %v1529
          %1531 = vdwg.mxu0
          %v1533 = vsel %vm871, %v1508, 0
          %1535 = vmatpush.msra.mxu0 0.0
          %1536 = vmatpush.msra.mxu0 0.0
          %1537 = vmatpush.msra.mxu0 0.0
          %1538 = vmatpush.msra.mxu0 0.0
          %1539 = vmatpush.msra.mxu0 0.0
          %1540 = vmatpush.msra.mxu0 0.0
          %1541 = vmatpush.msra.mxu0 0.0
          %1542 = vmatpush.msra.mxu0 0.0
          %1543 = vmatpush.msra.mxu0 0.0
          %1544 = vmatpush.msra.mxu0 0.0
          %1545 = vmatpush.msra.mxu0 0.0
          %1546 = vmatpush.msra.mxu0 0.0
          %1547 = vmatpush.msra.mxu0 0.0
          %1548 = vmatpush.msra.mxu0 0.0
          %1549 = vmatpush.msra.mxu0 %v1427
          %1550 = vmatpush.msra.mxu0 %v1426
          %1551 = vmatmul.f32.gmra.mxu0 %v1533
          %v1552 = vpop.f32.mrf.mxu0
          %v1553 = vadd.f32 0.0, %v1552
          %1554 = vdwg.mxu0
          %v1555 = vld [vmem:[%s13] sm:$0xf]
          %v1556 = vld [vmem:[%s13 + $0x4] sm:$0xf]
          %v1557 = vld [vmem:[%s13 + $0x8] sm:$0xf]
          %v1558 = vld [vmem:[%s13 + $0xc] sm:$0xf]
          %v1559 = vld [vmem:[%s13 + $0x10] sm:$0xf]
          %v1560 = vld [vmem:[%s13 + $0x14] sm:$0xf]
          %v1561 = vld [vmem:[%s13 + $0x18] sm:$0xf]
          %v1562 = vld [vmem:[%s13 + $0x1c] sm:$0xf]
          %v1563 = vpack.c.bf16 %v1530, %v1530
          %v1564 = vpack.c.bf16 %v1553, %v1553
          %v1569 = vunpack.c.l.b16 %v1559
          %v1570 = vunpack.c.l.b16 %v1560
          %v1571 = vunpack.c.l.b16 %v1561
          %v1572 = vunpack.c.l.b16 %v1562
          %v1573 = vpack.c.b16 %v1570, %v1569
          %v1574 = vpack.c.b16 %v1572, %v1571
          %v1578 = vsel %vm737, %v1564, 0
          %1580 = vmatpush.bf16.msra.mxu0 0
          %1581 = vmatpush.bf16.msra.mxu0 0
          %1582 = vmatpush.bf16.msra.mxu0 0
          %1583 = vmatpush.bf16.msra.mxu0 0
          %1584 = vmatpush.bf16.msra.mxu0 0
          %1585 = vmatpush.bf16.msra.mxu0 0
          %1586 = vmatpush.bf16.msra.mxu0 %v1574
          %1587 = vmatpush.bf16.msra.mxu0 %v1573
          %1588 = vmatmul.bf16.gmra.mxu0 %v1578
          %v1589 = vpop.f32.mrf.mxu0
          %v1590 = vadd.f32 0.0, %v1589
          %v1591 = vpop.f32.mrf.mxu0
          %1592 = vdwg.mxu0
          %v1597 = vunpack.c.l.b16 %v1555
          %v1598 = vunpack.c.l.b16 %v1556
          %v1599 = vunpack.c.l.b16 %v1557
          %v1600 = vunpack.c.l.b16 %v1558
          %v1601 = vpack.c.b16 %v1598, %v1597
          %v1602 = vpack.c.b16 %v1600, %v1599
          %v1606 = vsel %vm737, %v1563, 0
          %1608 = vmatpush.bf16.msra.mxu0 0
          %1609 = vmatpush.bf16.msra.mxu0 0
          %1610 = vmatpush.bf16.msra.mxu0 0
          %1611 = vmatpush.bf16.msra.mxu0 0
          %1612 = vmatpush.bf16.msra.mxu0 0
          %1613 = vmatpush.bf16.msra.mxu0 0
          %1614 = vmatpush.bf16.msra.mxu0 %v1602
          %1615 = vmatpush.bf16.msra.mxu0 %v1601
          %1616 = vmatmul.bf16.gmra.mxu0 %v1606
          %v1617 = vpop.f32.mrf.mxu0
          %v1618 = vadd.f32 %v1590, %v1617
          %v1619 = vpop.f32.mrf.mxu0
          %1620 = vdwg.mxu0
          %v1621 = vperm.slane %v710, 2
          %v1622 = vadd.f32 %v1618, %v1621
          %1623 = vmax.xlane.f32.xlu0 %v1622
          %v1624 = vpop.xlane.xlu0 %1623
          %v1625 = vsub.f32 %v1622, %v1624
          %v1626 = vmul.f32 %v1625, 1.442695
          %v1627 = vpow.pop %v1626
          %1628 = vadd.xlane.f32.xlu0 %v1627
          %v1629 = vpop.xlane.xlu0 %1628
          %v1630 = vlog2.pop %v1629
          %v1631 = vmul.f32 %v1630, 0.6931472
          %v1632 = vsub.f32 %v1625, %v1631
          %1633 = vst [vmem:[%s708] sm:$0xff] %v1632
        $region88: #{metadata2_forward.1} parent=75 // pred_fallthru
          _
        %p1634 = scmp.lt.s32.totalorder %s34, 6
        %s1635 = scalar_select %p1634, %s34, 6
        %p1636 = scmp.lt.s32.totalorder %s35, 0
        %s1637 = scalar_select %p1636, %s35, 0
        %s1638 = smul.addr %s1637, 2
        %s1639 = smul.addr %s1635, 2
        %s1640 = sadd.s32 %s1638, %s1639
        %s1641 = smul.addr %s1640, 8
        %s1642 = scalar_lea.vmem %s14, %s1641
        %p1643 = scmp.lt.s32.totalorder %s34, 6
        %s1644 = scalar_select %p1643, %s34, 6
        %p1645 = scmp.lt.s32.totalorder %s35, 0
        %s1646 = scalar_select %p1645, %s35, 0
        %s1647 = sadd.s32 %s1646, %s1644
        %s1648 = smul.addr %s1647, 8
        %s1649 = scalar_lea.vmem %s15, %s1648
        // Predicated region
        $region89: #{metadata2_forward.1} parent=75 // pred_check
          %p1650 = pneg %p401
        $region90: #{metadata2_forward.1} parent=75 // pred_check_branch
          %1652 = sbr.rel (%p1650) target = $region92
        $region91: #{metadata2_forward.1} parent=75 // pred_region
          _
        $region92: #{metadata2_forward.1} parent=75 // pred_fallthru
          _
        // Predicated region
        $region93: #{metadata2_forward.1} parent=75 // pred_check
          %p1653 = pneg %p429
        $region94: #{metadata2_forward.1} parent=75 // pred_check_branch
          %1655 = sbr.rel (%p1653) target = $region96
        $region95: #{metadata2_forward.1} parent=75 // pred_region
          _
        $region96: #{metadata2_forward.1} parent=75 // pred_fallthru
          _
      $region76: #{metadata2_forward.1} parent=5 // pred_fallthru
        _
      %p1656 = scmp.le.s32.totalorder 2, %s25
      // Predicated region
      $region97: #{metadata2_forward.1} parent=5 // pred_check
        %p1657 = pneg %p1656
      $region98: #{metadata2_forward.1} parent=5 // pred_check_branch
        %1659 = sbr.rel (%p1657) target = $region100
      $region99: #{metadata2_forward.1} parent=5 // pred_region
        %s1660 = ssub.s32 %s25, 2
        // Predicated region
        $region101: #{metadata2_forward.1} parent=99 // pred_check
          %p1661 = pneg %p407
        $region102: #{metadata2_forward.1} parent=99 // pred_check_branch
          %1663 = sbr.rel (%p1661) target = $region104
        $region103: #{metadata2_forward.1} parent=99 // pred_region
          %p1664 = scmp.lt.s32.totalorder %s36, 6
          %s1665 = scalar_select %p1664, %s36, 6
          %p1666 = scmp.lt.s32.totalorder %s37, 0
          %s1667 = scalar_select %p1666, %s37, 0
          %s1668 = smul.addr %s1667, 2
          %s1669 = smul.addr %s1665, 2
          %s1670 = sadd.s32 %s1668, %s1669
          %s1671 = smul.addr %s1670, 8
          %s1672 = scalar_lea.vmem %s14, %s1671
        $region104: #{metadata2_forward.1} parent=99 // pred_fallthru
          _
        // Predicated region
        $region105: #{metadata2_forward.1} parent=99 // pred_check
          %p1673 = pneg %p435
        $region106: #{metadata2_forward.1} parent=99 // pred_check_branch
          %1675 = sbr.rel (%p1673) target = $region108
        $region107: #{metadata2_forward.1} parent=99 // pred_region
          %p1676 = scmp.lt.s32.totalorder %s36, 6
          %s1677 = scalar_select %p1676, %s36, 6
          %p1678 = scmp.lt.s32.totalorder %s37, 0
          %s1679 = scalar_select %p1678, %s37, 0
          %s1680 = sadd.s32 %s1679, %s1677
          %s1681 = smul.addr %s1680, 8
          %s1682 = scalar_lea.vmem %s15, %s1681
        $region108: #{metadata2_forward.1} parent=99 // pred_fallthru
          _
      $region100: #{metadata2_forward.1} parent=5 // pred_fallthru
        _
    $region6: #{metadata2_forward.1} parent=1 // loop_footer
      %s29 = sadd.s32 1, %s25
    $region7: #{metadata2_forward.1} parent=1 // loop_footer_branch
      %24 = sbr.rel target = $region3
    $region8: #{metadata2_forward.1} parent=1 // loop_exit
      _
    %1683 = vsyncpa [#allocation3], 1
    %s1684 = scalar_lea.sflag [#allocation3], 1
    %1685 = vsyncpa %s1684, 1

</llo_original>
